<compile_context>
chip_gen: v7x
topology: tpu7x:2x2x1
jax: 0.10.0
libtpu: 0.0.40
codegen_flags: <defaults>
</compile_context>

<pallas_src>
import functools
import math

import jax
import jax.numpy as jnp
from jax.experimental import pallas as pl
from jax.experimental.pallas import tpu as pltpu


def _chip_kind():
    """Coarse TPU-generation detection for per-chip tuning."""
    try:
        kind = jax.devices()[0].device_kind.lower()
    except Exception:
        return "unknown"
    if "v5 lite" in kind or "v5e" in kind or "v5lite" in kind:
        return "v5e"
    if "v6" in kind or "trillium" in kind:
        return "v6e"
    if "v7" in kind:
        return "v7x"
    return "unknown"


def _chip_config():
    """Per-generation tile targets, VMEM budgets, K/V buffer depth, bf16 math."""
    kind = _chip_kind()
    if kind == "v6e":
        # 128 MiB physical VMEM; big tq halves K/V HBM re-reads.
        return dict(tq=512, tk=256, vmem=80 << 20, score_cap=16 << 20,
                    kv_buffers=2, bf16_math=True)
    if kind == "v5e":
        # 128 MiB VMEM but ~0.8 TB/s HBM and no bf16 VPU/EUP; deepen K/V pipe.
        return dict(tq=256, tk=256, vmem=64 << 20, score_cap=16 << 20,
                    kv_buffers=3, bf16_math=False)
    if kind == "v7x":
        # Only 64 MiB VMEM per TC, but 2.3x v6e HBM BW: keep tiles modest.
        return dict(tq=256, tk=256, vmem=40 << 20, score_cap=8 << 20,
                    kv_buffers=2, bf16_math=True)
    # Unknown chip: conservative defaults.
    return dict(tq=256, tk=256, vmem=32 << 20, score_cap=8 << 20,
                kv_buffers=2, bf16_math=False)


def _pick_tile(seq_len, target):
    """Largest tile <= target dividing seq_len; falls back to the full
    sequence (always a legal block).

    TODO(synk): for long sequences whose length has awkward factors (not a
    multiple of 8), this fallback makes the (H, S, S) f32 score temp very
    large; a padding path would be needed for that case.
    """
    t = min(target, seq_len)
    while t > 1 and seq_len % t:
        t //= 2
    # tq is the second-minor dim of the lane-dense output block, so it must be
    # a multiple of 8 or cover the full sequence.
    if t % 8 != 0:
        t = seq_len
    return t


def _flash_mha_kernel(q_ref, k_ref, v_ref, o_ref,
                      q_sc, m_sc, l_sc, acc_sc, *, scale, exp_dtype):
    """One (q-tile, batch, kv-tile) step of online-softmax attention.

    Ref shapes (after squeezed batch dim):
      q_ref : (tq, H, Dh)     k_ref/v_ref : (tk, H, Dh)     o_ref : (tq, H*Dh)
    Scratch (persist across the kv grid axis):
      q_sc  : (H, tq, Dh) in input dtype  -- pre-scaled, head-major Q
      m_sc/l_sc : (H, tq, 1) f32          -- running max / denom
      acc_sc : (H, tq, Dh) f32            -- f32 output accumulator
    """
    ki = pl.program_id(2)

    @pl.when(ki == 0)
    def _init():
        m_sc[...] = jnp.full(m_sc.shape, -jnp.inf, m_sc.dtype)
        l_sc[...] = jnp.zeros(l_sc.shape, l_sc.dtype)
        acc_sc[...] = jnp.zeros(acc_sc.shape, acc_sc.dtype)
        # Hoisted out of the kv loop: (tq, H, Dh) -> (H, tq, Dh) relayout plus
        # the 1/sqrt(Dh) scale happen once per q-tile, not once per kv step.
        q = jnp.swapaxes(q_ref[...], 0, 1)
        q_sc[...] = q * jnp.asarray(scale, q.dtype)

    q = q_sc[...]                                               # (H, tq, Dh)
    # Per-step in-VMEM head-major relayout of the streamed K/V blocks (this
    # replaces the full HBM transposes the naive version did in XLA).
    k = jnp.swapaxes(k_ref[...], 0, 1)                          # (H, tk, Dh)
    v = jnp.swapaxes(v_ref[...], 0, 1)                          # (H, tk, Dh)

    # Q K^T, contracting head_dim (lanes of both operands): no k.T relayout.
    # Operands keep their input dtype (bf16 stays bf16); accumulate in f32.
    s = jnp.einsum("hqd,hkd->hqk", q, k,
                   preferred_element_type=jnp.float32)          # (H, tq, tk)

    m_prev = m_sc[...]
    m_new = jnp.maximum(m_prev, jnp.max(s, axis=-1, keepdims=True))
    alpha = jnp.exp(m_prev - m_new)                              # (H, tq, 1) f32

    if exp_dtype == jnp.float32:
        # f32 exp path (v5e, or f32 inputs).
        p = jnp.exp(s - m_new)                                   # (H, tq, tk) f32
        l_sc[...] = alpha * l_sc[...] + jnp.sum(p, axis=-1, keepdims=True)
        pv = jnp.einsum("hqk,hkd->hqd", p.astype(v.dtype), v,
                        preferred_element_type=jnp.float32)
    else:
        # bf16 exp path (v6e/v7x with bf16 inputs): EUP/VPU are bf16-capable,
        # so produce P directly in bf16 and skip the extra full-size cast.
        p = jnp.exp((s - m_new).astype(exp_dtype))               # (H, tq, tk) bf16
        l_sc[...] = alpha * l_sc[...] + jnp.sum(
            p, axis=-1, keepdims=True, dtype=jnp.float32)
        pv = jnp.einsum("hqk,hkd->hqd", p, v,
                        preferred_element_type=jnp.float32)

    acc_sc[...] = alpha * acc_sc[...] + pv
    m_sc[...] = m_new

    @pl.when(ki == pl.num_programs(2) - 1)
    def _finalize():
        # Deferred normalization: one EUP approximate reciprocal per q row
        # instead of a per-element divide on the (tq, tk) score matrix.
        inv_l = pl.reciprocal(l_sc[...], approx=True)            # (H, tq, 1)
        out = acc_sc[...] * inv_l                                # (H, tq, Dh)
        # (H, tq, Dh) -> (tq, H*Dh): lane-dense output block (last dim = E).
        out = jnp.swapaxes(out, 0, 1).reshape(o_ref.shape)
        o_ref[...] = out.astype(o_ref.dtype)


def _flash_mha(q, k, v, *, scale):
    """q/k/v: [S, B, H, Dh] -> output [B, S, H*Dh] (lane-dense)."""
    S, B, H, Dh = q.shape
    E = H * Dh
    cfg = _chip_config()

    # Shrink tiles until the f32 (H, tq, tk) score block fits the per-chip cap.
    tq_t, tk_t = cfg["tq"], cfg["tk"]
    while H * tq_t * tk_t * 4 > cfg["score_cap"] and max(tq_t, tk_t) > 128:
        if tq_t >= tk_t:
            tq_t //= 2
        else:
            tk_t //= 2
    tq = _pick_tile(S, tq_t)
    tk = _pick_tile(S, tk_t)

    num_q_tiles = S // tq
    num_k_tiles = S // tk
    # q-tile axis leads so megacore sharding stays balanced even at B == 1;
    # kv is innermost (reduction / "arbitrary").
    grid = (num_q_tiles, B, num_k_tiles)

    # Inputs are blocked straight out of the [S, B, H, Dh] reshape: the last
    # two block dims (H, Dh) cover the full array dims, so no layout pass and
    # no (8,128) alignment issue; the batch dim is squeezed (None).
    q_spec = pl.BlockSpec((tq, None, H, Dh), lambda qi, b, ki: (qi, b, 0, 0))
    kv_block = (tk, None, H, Dh)
    kv_map = lambda qi, b, ki: (ki, b, 0, 0)
    if cfg["kv_buffers"] != 2:
        try:
            kv_spec = pl.BlockSpec(kv_block, kv_map,
                                   pipeline_mode=pl.Buffered(cfg["kv_buffers"]))
        except TypeError:
            kv_spec = pl.BlockSpec(kv_block, kv_map)
    else:
        kv_spec = pl.BlockSpec(kv_block, kv_map)
    # Lane-dense output: last block dim is the full embedding E = H*Dh.
    o_spec = pl.BlockSpec((None, tq, E), lambda qi, b, ki: (b, qi, 0))

    itemsize = jnp.dtype(q.dtype).itemsize
    cost = pl.CostEstimate(
        flops=4 * B * H * S * S * Dh,                 # QK^T + PV
        transcendentals=B * H * S * S,                # exp on the scores
        # Q read once, output written once, K and V streamed S/tq times each.
        bytes_accessed=B * E * S * itemsize * (2 + 2 * num_q_tiles),
    )

    # bf16 exp only where the VPU/EUP are bf16-capable and the data is bf16.
    exp_dtype = (q.dtype if (cfg["bf16_math"] and q.dtype == jnp.bfloat16)
                 else jnp.float32)

    kernel = functools.partial(_flash_mha_kernel, scale=scale,
                               exp_dtype=exp_dtype)

    return pl.pallas_call(
        kernel,
        out_shape=jax.ShapeDtypeStruct((B, S, E), q.dtype),
        grid_spec=pltpu.PrefetchScalarGridSpec(
            num_scalar_prefetch=0,
            grid=grid,
            in_specs=[q_spec, kv_spec, kv_spec],
            out_specs=o_spec,
            scratch_shapes=[
                pltpu.VMEM((H, tq, Dh), q.dtype),       # hoisted, scaled Q
                pltpu.VMEM((H, tq, 1), jnp.float32),    # running max
                pltpu.VMEM((H, tq, 1), jnp.float32),    # running denom
                pltpu.VMEM((H, tq, Dh), jnp.float32),   # f32 accumulator
            ],
        ),
        compiler_params=pltpu.CompilerParams(
            dimension_semantics=("parallel", "parallel", "arbitrary"),
            vmem_limit_bytes=cfg["vmem"],
        ),
        cost_estimate=cost,
    )(q, k, v)


class SelfCKAttn:
    """JAX/Pallas re-implementation of the PyTorch SelfCKAttn forward pass."""

    def __init__(self, num_sequences, seq_length, hidden_dim, num_heads,
                 head_dim, dropout=0.0, best_op_id=0):
        self.num_sequences = num_sequences
        self.seq_length = seq_length
        self.embed_dim = hidden_dim
        self.num_heads = num_heads
        self.dropout = dropout
        self.head_dim = self.embed_dim // self.num_heads
        assert self.head_dim * num_heads == self.embed_dim, \
            'embed_dim must be divisible by num_heads'
        # TODO(synk): attention dropout is not implemented (eval-mode kernel).
        assert dropout == 0.0, "dropout must be 0.0 for this Pallas kernel"
        self.best_op_id = best_op_id  # kernel-selection hint; ignored on TPU

    def forward(self, query, key, value, out):
        # query/key/value: [S, B, E]  (time, batch, hidden)
        S, B, E = query.shape
        H, Dh = self.num_heads, self.head_dim
        scale = 1.0 / math.sqrt(Dh)

        # Free reshapes only (no HBM transpose of the inputs).
        q4 = query.reshape(S, B, H, Dh)
        k4 = key.reshape(S, B, H, Dh)
        v4 = value.reshape(S, B, H, Dh)

        o_bse = _flash_mha(q4, k4, v4, scale=scale)   # [B, S, E], lane-dense
        o = jnp.swapaxes(o_bse, 0, 1)                 # single layout pass -> [S, B, E]

        # `out` is a preallocated buffer in the PyTorch API; functionally we
        # just return the computed result in its place.
        del out
        return (o, None)

    __call__ = forward


def _reference_attention(query, key, value, num_heads):
    """Pure-JAX reference for validation."""
    S, B, E = query.shape
    Dh = E // num_heads

    def to_heads(x):
        return jnp.transpose(x.reshape(S, B, num_heads, Dh), (1, 2, 0, 3))

    q, k, v = map(to_heads, (query, key, value))           # [B, H, S, Dh]
    s = jnp.einsum('bhqd,bhkd->bhqk', q, k) / math.sqrt(Dh)
    p = jax.nn.softmax(s, axis=-1)
    o = jnp.einsum('bhqk,bhkd->bhqd', p, v)                 # [B, H, S, Dh]
    return jnp.transpose(o, (2, 0, 1, 3)).reshape(S, B, E)


if __name__ == "__main__":
    num_sequences = 2   # batch
    seq_length = 8
    hidden_dim = 32
    num_heads = 4
    head_dim = hidden_dim // num_heads

    key0 = jax.random.PRNGKey(0)
    kq, kk, kv = jax.random.split(key0, 3)
    query = jax.random.normal(kq, (seq_length, num_sequences, hidden_dim),
                              dtype=jnp.float32)
    key_ = jax.random.normal(kk, (seq_length, num_sequences, hidden_dim),
                             dtype=jnp.float32)
    value = jax.random.normal(kv, (seq_length, num_sequences, hidden_dim),
                              dtype=jnp.float32)
    out_buf = jnp.zeros_like(query)

    attn = SelfCKAttn(num_sequences, seq_length, hidden_dim, num_heads,
                      head_dim, dropout=0.0, best_op_id=0)
    outputs, _ = attn(query, key_, value, out_buf)
    outputs = jax.block_until_ready(outputs)

    ref = _reference_attention(query, key_, value, num_heads)
    assert outputs.shape == (seq_length, num_sequences, hidden_dim)
    # Tolerance accounts for the EUP approximate reciprocal (~1e-3 rel error)
    # used for the deferred softmax normalization.
    assert jnp.allclose(outputs, ref, atol=2e-2, rtol=2e-2), "mismatch vs reference"

    print("KERNEL_OK")
</pallas_src>

<mosaic_0001>
module attributes {stable_mosaic.version = 11 : i64} {
  func.func @_flash_mha_kernel(%arg0: i32, %arg1: i32, %arg2: i32, %arg3: memref<8x1x4x8xf32, #tpu.memory_space<vmem>>, %arg4: memref<8x1x4x8xf32, #tpu.memory_space<vmem>>, %arg5: memref<8x1x4x8xf32, #tpu.memory_space<vmem>>, %arg6: memref<1x8x32xf32, #tpu.memory_space<vmem>>, %arg7: memref<4x8x8xf32, #tpu.memory_space<vmem>>, %arg8: memref<4x8x1xf32, #tpu.memory_space<vmem>>, %arg9: memref<4x8x1xf32, #tpu.memory_space<vmem>>, %arg10: memref<4x8x8xf32, #tpu.memory_space<vmem>>) attributes {dimension_semantics = [#tpu.dimension_semantics<parallel>, #tpu.dimension_semantics<parallel>, #tpu.dimension_semantics<arbitrary>], iteration_bounds = array<i64: 1, 2, 1>, scalar_prefetch = 0 : i64, scratch_operands = 4 : i64, tpu.core_type = #tpu.core_type<tc>, window_params = [{transform_indices = @transform_0, window_bounds = array<i64: 8, 1, 4, 8>}, {transform_indices = @transform_1, window_bounds = array<i64: 8, 1, 4, 8>}, {transform_indices = @transform_2, window_bounds = array<i64: 8, 1, 4, 8>}, {transform_indices = @transform_3, window_bounds = array<i64: 1, 8, 32>}]} {
    %c0_i32 = arith.constant 0 : i32
    %0 = arith.cmpi eq, %arg2, %c0_i32 : i32
    %1 = arith.extui %0 : i1 to i32
    %c0_i32_0 = arith.constant 0 : i32
    %2 = arith.cmpi ne, %1, %c0_i32_0 : i32
    scf.if %2 {
      %cst_34 = arith.constant 0xFF800000 : f32
      %36 = vector.broadcast %cst_34 : f32 to vector<4x8x1xf32>
      %c0_35 = arith.constant 0 : index
      %c0_36 = arith.constant 0 : index
      %c0_37 = arith.constant 0 : index
      %37 = vector.load %arg8[%c0_35, %c0_36, %c0_37] : memref<4x8x1xf32, #tpu.memory_space<vmem>>, vector<4x8x1xf32>
      tpu.vector_store %arg8[%c0_35, %c0_36, %c0_37], %36 {strides = array<i32>} : memref<4x8x1xf32, #tpu.memory_space<vmem>>, vector<4x8x1xf32>,
      %cst_38 = arith.constant 0.000000e+00 : f32
      %38 = vector.broadcast %cst_38 : f32 to vector<4x8x1xf32>
      %c0_39 = arith.constant 0 : index
      %c0_40 = arith.constant 0 : index
      %c0_41 = arith.constant 0 : index
      %39 = vector.load %arg9[%c0_39, %c0_40, %c0_41] : memref<4x8x1xf32, #tpu.memory_space<vmem>>, vector<4x8x1xf32>
      tpu.vector_store %arg9[%c0_39, %c0_40, %c0_41], %38 {strides = array<i32>} : memref<4x8x1xf32, #tpu.memory_space<vmem>>, vector<4x8x1xf32>,
      %cst_42 = arith.constant 0.000000e+00 : f32
      %40 = vector.broadcast %cst_42 : f32 to vector<4x8x8xf32>
      %c0_43 = arith.constant 0 : index
      %c0_44 = arith.constant 0 : index
      %c0_45 = arith.constant 0 : index
      %41 = vector.load %arg10[%c0_43, %c0_44, %c0_45] : memref<4x8x8xf32, #tpu.memory_space<vmem>>, vector<4x8x8xf32>
      tpu.vector_store %arg10[%c0_43, %c0_44, %c0_45], %40 {strides = array<i32>} : memref<4x8x8xf32, #tpu.memory_space<vmem>>, vector<4x8x8xf32>,
      %c0_46 = arith.constant 0 : index
      %c0_47 = arith.constant 0 : index
      %c0_48 = arith.constant 0 : index
      %c0_49 = arith.constant 0 : index
      %42 = vector.load %arg3[%c0_46, %c0_47, %c0_48, %c0_49] : memref<8x1x4x8xf32, #tpu.memory_space<vmem>>, vector<8x1x4x8xf32>
      %43 = vector.shape_cast %42 : vector<8x1x4x8xf32> to vector<8x4x8xf32>
      %44 = tpu.transpose %43, [1, 0, 2] : vector<8x4x8xf32> -> vector<4x8x8xf32>
      %cst_50 = arith.constant 0.353553385 : f32
      %45 = vector.broadcast %cst_50 : f32 to vector<4x8x8xf32>
      %46 = arith.mulf %44, %45 : vector<4x8x8xf32>
      %c0_51 = arith.constant 0 : index
      %c0_52 = arith.constant 0 : index
      %c0_53 = arith.constant 0 : index
      %47 = vector.load %arg7[%c0_51, %c0_52, %c0_53] : memref<4x8x8xf32, #tpu.memory_space<vmem>>, vector<4x8x8xf32>
      tpu.vector_store %arg7[%c0_51, %c0_52, %c0_53], %46 {strides = array<i32>} : memref<4x8x8xf32, #tpu.memory_space<vmem>>, vector<4x8x8xf32>,
    } else {
    }
    %c0 = arith.constant 0 : index
    %c0_1 = arith.constant 0 : index
    %c0_2 = arith.constant 0 : index
    %3 = vector.load %arg7[%c0, %c0_1, %c0_2] : memref<4x8x8xf32, #tpu.memory_space<vmem>>, vector<4x8x8xf32>
    %c0_3 = arith.constant 0 : index
    %c0_4 = arith.constant 0 : index
    %c0_5 = arith.constant 0 : index
    %c0_6 = arith.constant 0 : index
    %4 = vector.load %arg4[%c0_3, %c0_4, %c0_5, %c0_6] : memref<8x1x4x8xf32, #tpu.memory_space<vmem>>, vector<8x1x4x8xf32>
    %5 = vector.shape_cast %4 : vector<8x1x4x8xf32> to vector<8x4x8xf32>
    %6 = tpu.transpose %5, [1, 0, 2] : vector<8x4x8xf32> -> vector<4x8x8xf32>
    %c0_7 = arith.constant 0 : index
    %c0_8 = arith.constant 0 : index
    %c0_9 = arith.constant 0 : index
    %c0_10 = arith.constant 0 : index
    %7 = vector.load %arg5[%c0_7, %c0_8, %c0_9, %c0_10] : memref<8x1x4x8xf32, #tpu.memory_space<vmem>>, vector<8x1x4x8xf32>
    %8 = vector.shape_cast %7 : vector<8x1x4x8xf32> to vector<8x4x8xf32>
    %9 = tpu.transpose %8, [1, 0, 2] : vector<8x4x8xf32> -> vector<4x8x8xf32>
    "tpu.trace_start"() <{level = 10 : i32, message = "hqd,hkd->hqk"}> : () -> ()
    %cst = arith.constant dense<0.000000e+00> : vector<4x8x8xf32>
    %10 = tpu.matmul %3, %6, %cst {dimension_numbers = #tpu.dot_dimension_numbers<[2], [2], [1], [1], [0, 0, 0, 1, 1, 1], [0], [0]>} : vector<4x8x8xf32>, vector<4x8x8xf32>, vector<4x8x8xf32> -> vector<4x8x8xf32>
    "tpu.trace_stop"() : () -> ()
    %c0_11 = arith.constant 0 : index
    %c0_12 = arith.constant 0 : index
    %c0_13 = arith.constant 0 : index
    %11 = vector.load %arg8[%c0_11, %c0_12, %c0_13] : memref<4x8x1xf32, #tpu.memory_space<vmem>>, vector<4x8x1xf32>
    %cst_14 = arith.constant dense<0xFF800000> : vector<4x8xf32>
    %12 = vector.multi_reduction <maximumf>, %10, %cst_14 [2] : vector<4x8x8xf32> to vector<4x8xf32>
    %13 = vector.shape_cast %12 : vector<4x8xf32> to vector<4x8x1xf32>
    %14 = arith.maximumf %11, %13 : vector<4x8x1xf32>
    %15 = arith.subf %11, %14 : vector<4x8x1xf32>
    %16 = math.exp %15 : vector<4x8x1xf32>
    %17 = vector.broadcast %14 : vector<4x8x1xf32> to vector<4x8x8xf32>
    %18 = arith.subf %10, %17 : vector<4x8x8xf32>
    %19 = math.exp %18 : vector<4x8x8xf32>
    %c0_15 = arith.constant 0 : index
    %c0_16 = arith.constant 0 : index
    %c0_17 = arith.constant 0 : index
    %20 = vector.load %arg9[%c0_15, %c0_16, %c0_17] : memref<4x8x1xf32, #tpu.memory_space<vmem>>, vector<4x8x1xf32>
    %21 = arith.mulf %16, %20 : vector<4x8x1xf32>
    %cst_18 = arith.constant dense<0.000000e+00> : vector<4x8xf32>
    %22 = vector.multi_reduction <add>, %19, %cst_18 [2] : vector<4x8x8xf32> to vector<4x8xf32>
    %23 = vector.shape_cast %22 : vector<4x8xf32> to vector<4x8x1xf32>
    %24 = arith.addf %21, %23 : vector<4x8x1xf32>
    %c0_19 = arith.constant 0 : index
    %c0_20 = arith.constant 0 : index
    %c0_21 = arith.constant 0 : index
    %25 = vector.load %arg9[%c0_19, %c0_20, %c0_21] : memref<4x8x1xf32, #tpu.memory_space<vmem>>, vector<4x8x1xf32>
    tpu.vector_store %arg9[%c0_19, %c0_20, %c0_21], %24 {strides = array<i32>} : memref<4x8x1xf32, #tpu.memory_space<vmem>>, vector<4x8x1xf32>,
    "tpu.trace_start"() <{level = 10 : i32, message = "hqk,hkd->hqd"}> : () -> ()
    %cst_22 = arith.constant dense<0.000000e+00> : vector<4x8x8xf32>
    %26 = tpu.matmul %19, %9, %cst_22 {dimension_numbers = #tpu.dot_dimension_numbers<[2], [1], [1], [2], [0, 0, 0, 1, 1, 2], [0], [0]>} : vector<4x8x8xf32>, vector<4x8x8xf32>, vector<4x8x8xf32> -> vector<4x8x8xf32>
    "tpu.trace_stop"() : () -> ()
    %c0_23 = arith.constant 0 : index
    %c0_24 = arith.constant 0 : index
    %c0_25 = arith.constant 0 : index
    %27 = vector.load %arg10[%c0_23, %c0_24, %c0_25] : memref<4x8x8xf32, #tpu.memory_space<vmem>>, vector<4x8x8xf32>
    %28 = vector.broadcast %16 : vector<4x8x1xf32> to vector<4x8x8xf32>
    %29 = arith.mulf %28, %27 : vector<4x8x8xf32>
    %30 = arith.addf %29, %26 : vector<4x8x8xf32>
    %c0_26 = arith.constant 0 : index
    %c0_27 = arith.constant 0 : index
    %c0_28 = arith.constant 0 : index
    %31 = vector.load %arg10[%c0_26, %c0_27, %c0_28] : memref<4x8x8xf32, #tpu.memory_space<vmem>>, vector<4x8x8xf32>
    tpu.vector_store %arg10[%c0_26, %c0_27, %c0_28], %30 {strides = array<i32>} : memref<4x8x8xf32, #tpu.memory_space<vmem>>, vector<4x8x8xf32>,
    %c0_29 = arith.constant 0 : index
    %c0_30 = arith.constant 0 : index
    %c0_31 = arith.constant 0 : index
    %32 = vector.load %arg8[%c0_29, %c0_30, %c0_31] : memref<4x8x1xf32, #tpu.memory_space<vmem>>, vector<4x8x1xf32>
    tpu.vector_store %arg8[%c0_29, %c0_30, %c0_31], %14 {strides = array<i32>} : memref<4x8x1xf32, #tpu.memory_space<vmem>>, vector<4x8x1xf32>,
    %c0_i32_32 = arith.constant 0 : i32
    %33 = arith.cmpi eq, %arg2, %c0_i32_32 : i32
    %34 = arith.extui %33 : i1 to i32
    %c0_i32_33 = arith.constant 0 : i32
    %35 = arith.cmpi ne, %34, %c0_i32_33 : i32
    scf.if %35 {
      %c0_34 = arith.constant 0 : index
      %c0_35 = arith.constant 0 : index
      %c0_36 = arith.constant 0 : index
      %36 = vector.load %arg9[%c0_34, %c0_35, %c0_36] : memref<4x8x1xf32, #tpu.memory_space<vmem>>, vector<4x8x1xf32>
      %37 = tpu.reciprocal %36 {approx = true} : vector<4x8x1xf32> -> vector<4x8x1xf32>
      %c0_37 = arith.constant 0 : index
      %c0_38 = arith.constant 0 : index
      %c0_39 = arith.constant 0 : index
      %38 = vector.load %arg10[%c0_37, %c0_38, %c0_39] : memref<4x8x8xf32, #tpu.memory_space<vmem>>, vector<4x8x8xf32>
      %39 = vector.broadcast %37 : vector<4x8x1xf32> to vector<4x8x8xf32>
      %40 = arith.mulf %38, %39 : vector<4x8x8xf32>
      %41 = tpu.transpose %40, [1, 0, 2] : vector<4x8x8xf32> -> vector<8x4x8xf32>
      %42 = vector.shape_cast %41 : vector<8x4x8xf32> to vector<8x32xf32>
      %c0_40 = arith.constant 0 : index
      %c0_41 = arith.constant 0 : index
      %c0_42 = arith.constant 0 : index
      %43 = vector.load %arg6[%c0_40, %c0_41, %c0_42] : memref<1x8x32xf32, #tpu.memory_space<vmem>>, vector<1x8x32xf32>
      %44 = vector.shape_cast %43 : vector<1x8x32xf32> to vector<8x32xf32>
      %45 = vector.shape_cast %42 : vector<8x32xf32> to vector<1x8x32xf32>
      tpu.vector_store %arg6[%c0_40, %c0_41, %c0_42], %45 {strides = array<i32>} : memref<1x8x32xf32, #tpu.memory_space<vmem>>, vector<1x8x32xf32>,
    } else {
    }
    return
  }
  func.func @transform_0(%arg0: i32, %arg1: i32, %arg2: i32) -> (i32, i32, i32, i32) {
    %c0_i32 = arith.constant 0 : i32
    %c0_i32_0 = arith.constant 0 : i32
    %c0_i32_1 = arith.constant 0 : i32
    return %arg0, %arg1, %c0_i32, %c0_i32_0 : i32, i32, i32, i32
  }
  func.func @transform_1(%arg0: i32, %arg1: i32, %arg2: i32) -> (i32, i32, i32, i32) {
    %c0_i32 = arith.constant 0 : i32
    %c0_i32_0 = arith.constant 0 : i32
    %c0_i32_1 = arith.constant 0 : i32
    return %arg2, %arg1, %c0_i32, %c0_i32_0 : i32, i32, i32, i32
  }
  func.func @transform_2(%arg0: i32, %arg1: i32, %arg2: i32) -> (i32, i32, i32, i32) {
    %c0_i32 = arith.constant 0 : i32
    %c0_i32_0 = arith.constant 0 : i32
    %c0_i32_1 = arith.constant 0 : i32
    return %arg2, %arg1, %c0_i32, %c0_i32_0 : i32, i32, i32, i32
  }
  func.func @transform_3(%arg0: i32, %arg1: i32, %arg2: i32) -> (i32, i32, i32) {
    %c0_i32 = arith.constant 0 : i32
    %c0_i32_0 = arith.constant 0 : i32
    return %arg1, %arg0, %c0_i32 : i32, i32, i32
  }
}

</mosaic_0001>

<llo_original>
// kernel: tpu_custom_call.1
$region0: #{tpu_custom_call.1}
  #allocation0 [shape = 'u32[]', space=smem, size = 0x4, offset = 0x4, fixed_abs, tag = 'smem constant byte address 0x4 - core index']
  #allocation1 [shape = 'u32[144,128]{1,0:T(1,128)}', space=vmem, size = 0x12000, scoped, tag = 'internal scratch']
  #allocation2 [shape = 'f32[4,8,8]{2,1,0:T(8,128)}', space=vmem, size = 0x4000, scoped, tag = 'scratch operand']
  #allocation3 [shape = 'f32[4,8,1]{2,1,0:T(8,128)}', space=vmem, size = 0x4000, scoped, tag = 'scratch operand']
  #allocation4 [shape = 'f32[4,8,1]{2,1,0:T(8,128)}', space=vmem, size = 0x4000, scoped, tag = 'scratch operand']
  #allocation5 [shape = 'f32[4,8,8]{2,1,0:T(8,128)}', space=vmem, size = 0x4000, scoped, tag = 'scratch operand']
  %s0 = inlined_call_operand.hbm [shape: f32[8,2,4,8], index: 0, kind: input, shape index: {}]
  %s1 = inlined_call_operand.hbm [shape: f32[8,2,4,8], index: 1, kind: input, shape index: {}]
  %s2 = inlined_call_operand.hbm [shape: f32[8,2,4,8], index: 2, kind: input, shape index: {}]
  %s3 = inlined_call_operand.hbm [shape: f32[2,8,32], index: 3, kind: output, shape index: {}]
  %s4 = sld [smem:[#allocation0]]
  $region65: #{tpu_custom_call.1} parent=0
    _
  %s6 = ssub.s32 1, %s4
  %s7 = scalar_select 0, %s6, %s4
  $region1: #{tpu_custom_call.1} parent=0
    #allocation6 [shape = 'u8[32768]{0}', space=vmem, size = 0x8000, scoped, tag = 'input window, operand 0']
    #allocation7 [shape = 's32[2]{0}', space=sflag, size = 0x8, scoped, tag = 'scoped memory for tpu_custom_call.1']
    #allocation8 [shape = 's32[2]{0}', space=sflag, size = 0x8, scoped, tag = 'scoped memory for tpu_custom_call.1']
    #allocation9 [shape = 'u8[32768]{0}', space=vmem, size = 0x8000, scoped, tag = 'input window, operand 1']
    #allocation10 [shape = 's32[2]{0}', space=sflag, size = 0x8, scoped, tag = 'scoped memory for tpu_custom_call.1']
    #allocation11 [shape = 'u8[32768]{0}', space=vmem, size = 0x8000, scoped, tag = 'input window, operand 2']
    #allocation12 [shape = 'u8[8192]{0}', space=vmem, size = 0x2000, scoped, tag = 'output window, operand 0']
    %8 = vsyncpa [#allocation7], 0
    %s9 = scalar_lea.sflag [#allocation7], 1
    %10 = vsyncpa %s9, 0
    %11 = vsyncpa [#allocation10], 0
    %s12 = scalar_lea.sflag [#allocation10], 1
    %13 = vsyncpa %s12, 0
    %14 = vsyncpa [#allocation8], 0
    %s15 = scalar_lea.sflag [#allocation8], 1
    %16 = vsyncpa %s15, 0
    loop: start=0, step=1, limit=4
    $region2: #{tpu_custom_call.1} parent=1 // loop_pre_header
      _
    $region3: #{tpu_custom_call.1} parent=1 // loop_header
      %s18 = sphi 0, %s22
      %p19 = scmp.ge.s32.totalorder %s18, 4
      %s25 = sphi 0, %s44
      %s26 = sphi 0, %s40
      %s27 = sphi 0, %s36
      %s28 = sphi 0, %s25
      %s29 = sphi 0, %s26
      %s30 = sphi 0, %s27
      %s31 = sphi 0, %s28
      %s32 = sphi 0, %s29
      %s33 = sphi 0, %s30
      %s49 = sphi 0, %s51
      %s52 = sphi 0, %s49
      %s53 = sphi 0, %s52
      %s69 = sphi 0, %s53
      %s77 = sphi 0, %s79
      %s80 = sphi 0, %s77
      %s81 = sphi 0, %s80
      %s97 = sphi 0, %s81
      %s105 = sphi 0, %s107
      %s108 = sphi 0, %s105
      %s109 = sphi 0, %s108
      %s125 = sphi 0, %s109
      %s133 = sphi 0, %s135
      %s136 = sphi 0, %s133
      %s137 = sphi 0, %s136
      %s153 = sphi 0, %s137
    $region4: #{tpu_custom_call.1} parent=1 // loop_header_branch
      %21 = sbr.rel (%p19) target = $region8
    $region5: #{tpu_custom_call.1} parent=1 // loop_body
      %s23 = ssub.s32 %s18, 1
      %s24 = ssub.s32 %s18, 2
      %s34 = sadd.s32 1, %s27
      %p35 = scmp.ge.s32.totalorder %s34, 1
      %s36 = scalar_select %p35, 0, %s34
      %s37 = sadd.s32 1, %s26
      %s38 = scalar_select %p35, %s37, %s26
      %p39 = scmp.ge.s32.totalorder %s38, 2
      %s40 = scalar_select %p39, 0, %s38
      %s41 = sadd.s32 1, %s25
      %s42 = scalar_select %p39, %s41, %s25
      %p43 = scmp.ge.s32.totalorder %s42, 1
      %s44 = scalar_select %p43, 0, %s42
      %s45 = ssub.s32 %s25, %s44
      %s46 = ssub.s32 %s26, %s40
      %s47 = sor.u32 %s45, %s46
      %p48 = scmp.eq.s32.totalorder %s47, 0
      %s50 = sadd.s32 %s49, 1
      %s51 = scalar_select %p48, %s49, %s50
      %p54 = pneg %p48
      %p55 = scmp.eq.s32.totalorder %s18, 1
      %p56 = por %p54, %p55
      %p57 = scmp.ne.s32.totalorder %s49, %s52
      %p58 = scmp.eq.s32.totalorder %s18, 0
      %p59 = por %p57, %p58
      %p60 = scmp.ne.s32.totalorder %s49, %s52
      %p61 = scmp.eq.s32.totalorder %s23, 1
      %p62 = por %p60, %p61
      %p63 = scmp.ne.s32.totalorder %s52, %s53
      %p64 = scmp.eq.s32.totalorder %s23, 0
      %p65 = por %p63, %p64
      %p66 = scmp.ne.s32.totalorder %s52, %s53
      %p67 = scmp.eq.s32.totalorder %s24, 1
      %p68 = por %p66, %p67
      %p70 = scmp.ne.s32.totalorder %s53, %s69
      %p71 = scmp.eq.s32.totalorder %s24, 0
      %p72 = por %p70, %p71
      %s73 = ssub.s32 %s27, %s36
      %s74 = ssub.s32 %s26, %s40
      %s75 = sor.u32 %s73, %s74
      %p76 = scmp.eq.s32.totalorder %s75, 0
      %s78 = sadd.s32 %s77, 1
      %s79 = scalar_select %p76, %s77, %s78
      %p82 = pneg %p76
      %p83 = scmp.eq.s32.totalorder %s18, 1
      %p84 = por %p82, %p83
      %p85 = scmp.ne.s32.totalorder %s77, %s80
      %p86 = scmp.eq.s32.totalorder %s18, 0
      %p87 = por %p85, %p86
      %p88 = scmp.ne.s32.totalorder %s77, %s80
      %p89 = scmp.eq.s32.totalorder %s23, 1
      %p90 = por %p88, %p89
      %p91 = scmp.ne.s32.totalorder %s80, %s81
      %p92 = scmp.eq.s32.totalorder %s23, 0
      %p93 = por %p91, %p92
      %p94 = scmp.ne.s32.totalorder %s80, %s81
      %p95 = scmp.eq.s32.totalorder %s24, 1
      %p96 = por %p94, %p95
      %p98 = scmp.ne.s32.totalorder %s81, %s97
      %p99 = scmp.eq.s32.totalorder %s24, 0
      %p100 = por %p98, %p99
      %s101 = ssub.s32 %s27, %s36
      %s102 = ssub.s32 %s26, %s40
      %s103 = sor.u32 %s101, %s102
      %p104 = scmp.eq.s32.totalorder %s103, 0
      %s106 = sadd.s32 %s105, 1
      %s107 = scalar_select %p104, %s105, %s106
      %p110 = pneg %p104
      %p111 = scmp.eq.s32.totalorder %s18, 1
      %p112 = por %p110, %p111
      %p113 = scmp.ne.s32.totalorder %s105, %s108
      %p114 = scmp.eq.s32.totalorder %s18, 0
      %p115 = por %p113, %p114
      %p116 = scmp.ne.s32.totalorder %s105, %s108
      %p117 = scmp.eq.s32.totalorder %s23, 1
      %p118 = por %p116, %p117
      %p119 = scmp.ne.s32.totalorder %s108, %s109
      %p120 = scmp.eq.s32.totalorder %s23, 0
      %p121 = por %p119, %p120
      %p122 = scmp.ne.s32.totalorder %s108, %s109
      %p123 = scmp.eq.s32.totalorder %s24, 1
      %p124 = por %p122, %p123
      %p126 = scmp.ne.s32.totalorder %s109, %s125
      %p127 = scmp.eq.s32.totalorder %s24, 0
      %p128 = por %p126, %p127
      %s129 = ssub.s32 %s26, %s40
      %s130 = ssub.s32 %s25, %s44
      %s131 = sor.u32 %s129, %s130
      %p132 = scmp.eq.s32.totalorder %s131, 0
      %s134 = sadd.s32 %s133, 1
      %s135 = scalar_select %p132, %s133, %s134
      %p138 = pneg %p132
      %p139 = scmp.eq.s32.totalorder %s18, 1
      %p140 = por %p138, %p139
      %p141 = scmp.ne.s32.totalorder %s133, %s136
      %p142 = scmp.eq.s32.totalorder %s18, 0
      %p143 = por %p141, %p142
      %p144 = scmp.ne.s32.totalorder %s133, %s136
      %p145 = scmp.eq.s32.totalorder %s23, 1
      %p146 = por %p144, %p145
      %p147 = scmp.ne.s32.totalorder %s136, %s137
      %p148 = scmp.eq.s32.totalorder %s23, 0
      %p149 = por %p147, %p148
      %p150 = scmp.ne.s32.totalorder %s136, %s137
      %p151 = scmp.eq.s32.totalorder %s24, 1
      %p152 = por %p150, %p151
      %p154 = scmp.ne.s32.totalorder %s137, %s153
      %p155 = scmp.eq.s32.totalorder %s24, 0
      %p156 = por %p154, %p155
      %p157 = scmp.le.s32.totalorder 1, %s18
      %p158 = scmp.lt.s32.totalorder %s18, 3
      %p159 = pnand %p157, %p158
      %p160 = pneg %p159
      // Predicated region
      $region9: #{tpu_custom_call.1} parent=5 // pred_check
        _
      $region10: #{tpu_custom_call.1} parent=5 // pred_check_branch
        %162 = sbr.rel (%p159) target = $region12
      $region11: #{tpu_custom_call.1} parent=5 // pred_region
        %s163 = ssub.s32 %s18, 1
      $region12: #{tpu_custom_call.1} parent=5 // pred_fallthru
        _
      %p164 = scmp.lt.s32.totalorder %s18, 2
      // Predicated region
      $region13: #{tpu_custom_call.1} parent=5 // pred_check
        %p165 = pneg %p164
      $region14: #{tpu_custom_call.1} parent=5 // pred_check_branch
        %167 = sbr.rel (%p165) target = $region16
      $region15: #{tpu_custom_call.1} parent=5 // pred_region
        // Predicated region
        $region17: #{tpu_custom_call.1} parent=15 // pred_check
          %p168 = pneg %p59
        $region18: #{tpu_custom_call.1} parent=15 // pred_check_branch
          %170 = sbr.rel (%p168) target = $region20
        $region19: #{tpu_custom_call.1} parent=15 // pred_region
          %s171 = sand.u32 %s49, 1
          %s172 = scalar_lea.sflag [#allocation7], %s171
          %s173 = sand.u32 %s49, 1
          %s174 = smul.addr %s173, 32
          %s175 = scalar_lea.vmem [#allocation6], %s174
          %s176 = smul.u32 8, %s25
          %s178 = ssub.s32 512, 512
          %179 = vsyncadd %s172, %s178
          %s180 = smul.addr %s176, 2
          %s181 = sadd.s32 %s26, %s180
          %s182 = smul.addr %s181, 64
          %s183 = scalar_lea.hbm %s0, %s182
          %s184 = sshll.u32 %s175, 4
          %s185 = int_to_ptr.vmem [resolvable:$true] %s184
          %190 = dma.hbm_to_vmem [thread:$0]  %s183, 512, %s185, %s172, 128, 64, 4
        $region20: #{tpu_custom_call.1} parent=15 // pred_fallthru
          _
        // Predicated region
        $region21: #{tpu_custom_call.1} parent=15 // pred_check
          %p191 = pneg %p87
        $region22: #{tpu_custom_call.1} parent=15 // pred_check_branch
          %193 = sbr.rel (%p191) target = $region24
        $region23: #{tpu_custom_call.1} parent=15 // pred_region
          %s194 = sand.u32 %s18, 1
          %s195 = scalar_lea.sflag [#allocation10], %s194
          %s196 = sand.u32 %s77, 1
          %s197 = smul.addr %s196, 32
          %s198 = scalar_lea.vmem [#allocation9], %s197
          %s199 = smul.u32 8, %s27
          %s201 = ssub.s32 512, 512
          %202 = vsyncadd %s195, %s201
          %s203 = smul.addr %s199, 2
          %s204 = sadd.s32 %s26, %s203
          %s205 = smul.addr %s204, 64
          %s206 = scalar_lea.hbm %s1, %s205
          %s207 = sshll.u32 %s198, 4
          %s208 = int_to_ptr.vmem [resolvable:$true] %s207
          %213 = dma.hbm_to_vmem [thread:$0]  %s206, 512, %s208, %s195, 128, 64, 4
        $region24: #{tpu_custom_call.1} parent=15 // pred_fallthru
          _
        // Predicated region
        $region25: #{tpu_custom_call.1} parent=15 // pred_check
          %p214 = pneg %p115
        $region26: #{tpu_custom_call.1} parent=15 // pred_check_branch
          %216 = sbr.rel (%p214) target = $region28
        $region27: #{tpu_custom_call.1} parent=15 // pred_region
          %s217 = sand.u32 %s18, 1
          %s218 = scalar_lea.sflag [#allocation10], %s217
          %s219 = sand.u32 %s105, 1
          %s220 = smul.addr %s219, 32
          %s221 = scalar_lea.vmem [#allocation11], %s220
          %s222 = smul.u32 8, %s27
          %s224 = ssub.s32 512, 512
          %225 = vsyncadd %s218, %s224
          %s226 = smul.addr %s222, 2
          %s227 = sadd.s32 %s26, %s226
          %s228 = smul.addr %s227, 64
          %s229 = scalar_lea.hbm %s2, %s228
          %s230 = sshll.u32 %s221, 4
          %s231 = int_to_ptr.vmem [resolvable:$true] %s230
          %236 = dma.hbm_to_vmem [thread:$0]  %s229, 512, %s231, %s218, 128, 64, 4
        $region28: #{tpu_custom_call.1} parent=15 // pred_fallthru
          _
      $region16: #{tpu_custom_call.1} parent=5 // pred_fallthru
        _
      %p237 = scmp.le.s32.totalorder 1, %s18
      %p238 = scmp.lt.s32.totalorder %s18, 3
      %p239 = pnand %p237, %p238
      %p240 = pneg %p239
      // Predicated region
      $region29: #{tpu_custom_call.1} parent=5 // pred_check
        _
      $region30: #{tpu_custom_call.1} parent=5 // pred_check_branch
        %242 = sbr.rel (%p239) target = $region32
      $region31: #{tpu_custom_call.1} parent=5 // pred_region
        %s243 = ssub.s32 %s18, 1
        %s244 = sand.u32 %s52, 1
        %s245 = scalar_lea.sflag [#allocation7], %s244
        %s246 = sand.u32 %s52, 1
        %s247 = smul.addr %s246, 32
        %s248 = scalar_lea.vmem [#allocation6], %s247
        // Predicated region
        $region33: #{tpu_custom_call.1} parent=31 // pred_check
          %p249 = pneg %p65
        $region34: #{tpu_custom_call.1} parent=31 // pred_check_branch
          %251 = sbr.rel (%p249) target = $region36
        $region35: #{tpu_custom_call.1} parent=31 // pred_region
          %252 = dma.done %s245, 512
        $region36: #{tpu_custom_call.1} parent=31 // pred_fallthru
          _
        %s253 = sand.u32 %s23, 1
        %s254 = scalar_lea.sflag [#allocation10], %s253
        %s255 = sand.u32 %s80, 1
        %s256 = smul.addr %s255, 32
        %s257 = scalar_lea.vmem [#allocation9], %s256
        // Predicated region
        $region37: #{tpu_custom_call.1} parent=31 // pred_check
          %p258 = pneg %p93
        $region38: #{tpu_custom_call.1} parent=31 // pred_check_branch
          %260 = sbr.rel (%p258) target = $region40
        $region39: #{tpu_custom_call.1} parent=31 // pred_region
          %261 = dma.done %s254, 512
        $region40: #{tpu_custom_call.1} parent=31 // pred_fallthru
          _
        %s262 = sand.u32 %s23, 1
        %s263 = scalar_lea.sflag [#allocation10], %s262
        %s264 = sand.u32 %s108, 1
        %s265 = smul.addr %s264, 32
        %s266 = scalar_lea.vmem [#allocation11], %s265
        // Predicated region
        $region41: #{tpu_custom_call.1} parent=31 // pred_check
          %p267 = pneg %p121
        $region42: #{tpu_custom_call.1} parent=31 // pred_check_branch
          %269 = sbr.rel (%p267) target = $region44
        $region43: #{tpu_custom_call.1} parent=31 // pred_region
          %270 = dma.done %s263, 512
        $region44: #{tpu_custom_call.1} parent=31 // pred_fallthru
          _
        %s271 = sand.u32 %s52, 1
        %s272 = scalar_lea.sflag [#allocation7], %s271
        %s273 = sand.u32 %s52, 1
        %s274 = smul.addr %s273, 32
        %s275 = scalar_lea.vmem [#allocation6], %s274
        %p276 = pneg %p65
        %p277 = pneg %p62
        %s278 = sand.u32 %s23, 1
        %s279 = scalar_lea.sflag [#allocation10], %s278
        %s280 = sand.u32 %s80, 1
        %s281 = smul.addr %s280, 32
        %s282 = scalar_lea.vmem [#allocation9], %s281
        %p283 = pneg %p93
        %p284 = pneg %p90
        %s285 = sand.u32 %s23, 1
        %s286 = scalar_lea.sflag [#allocation10], %s285
        %s287 = sand.u32 %s108, 1
        %s288 = smul.addr %s287, 32
        %s289 = scalar_lea.vmem [#allocation11], %s288
        %p290 = pneg %p121
        %p291 = pneg %p118
        %p292 = pneg %p149
        %p293 = pneg %p146
        %s294 = sand.u32 %s136, 1
        %s295 = scalar_lea.sflag [#allocation8], %s294
        %s296 = sand.u32 %s136, 1
        %s297 = smul.addr %s296, 8
        %s298 = scalar_lea.vmem [#allocation12], %s297
        %s299 = smul.u32 8, %s28
        %s300 = smul.u32 8, %s30
        %s301 = smul.u32 8, %s30
        %p302 = scmp.eq.s32.totalorder %s30, 0
        // Predicated region
        $region45: #{tpu_custom_call.1} parent=31 // pred_check
          %p303 = pneg %p302
        $region46: #{tpu_custom_call.1} parent=31 // pred_check_branch
          %305 = sbr.rel (%p303) target = $region48
        $region47: #{tpu_custom_call.1} parent=31 // pred_region
          %vm306 = vcmask 7168
          %307 = vst.msk [vmem:[#allocation3] sm:$0xff] %vm306, -inf
          %308 = vst.msk [vmem:[#allocation3 + $0x8] sm:$0xff] %vm306, -inf
          %309 = vst.msk [vmem:[#allocation3 + $0x10] sm:$0xff] %vm306, -inf
          %310 = vst.msk [vmem:[#allocation3 + $0x18] sm:$0xff] %vm306, -inf
          %311 = vst.msk [vmem:[#allocation4] sm:$0xff] %vm306, 0.0
          %312 = vst.msk [vmem:[#allocation4 + $0x8] sm:$0xff] %vm306, 0.0
          %313 = vst.msk [vmem:[#allocation4 + $0x10] sm:$0xff] %vm306, 0.0
          %314 = vst.msk [vmem:[#allocation4 + $0x18] sm:$0xff] %vm306, 0.0
          %vm315 = vcmask 64512
          %316 = vst.msk [vmem:[#allocation5] sm:$0xff] %vm315, 0.0
          %317 = vst.msk [vmem:[#allocation5 + $0x8] sm:$0xff] %vm315, 0.0
          %318 = vst.msk [vmem:[#allocation5 + $0x10] sm:$0xff] %vm315, 0.0
          %319 = vst.msk [vmem:[#allocation5 + $0x18] sm:$0xff] %vm315, 0.0
          %v320 = vld [vmem:[%s248] sm:$0xf]
          %v321 = vld [vmem:[%s248 + $0x4] sm:$0xf]
          %v322 = vld [vmem:[%s248 + $0x8] sm:$0xf]
          %v323 = vld [vmem:[%s248 + $0xc] sm:$0xf]
          %v324 = vld [vmem:[%s248 + $0x10] sm:$0xf]
          %v325 = vld [vmem:[%s248 + $0x14] sm:$0xf]
          %v326 = vld [vmem:[%s248 + $0x18] sm:$0xf]
          %v327 = vld [vmem:[%s248 + $0x1c] sm:$0xf]
          %v328 = vcombine.low %v320, %v322
          %v330 = vunpack.c.l.s4 1983009808
          %v331 = vunpack.c.0.s8 %v330
          %v332 = vlaneseq
          %v333 = vshrl.u32 %v332, 7
          %v334 = vsub.s32 %v331, %v333
          %v335 = vrot.slane %v328, %v334
          %v336 = vcombine.low %v321, %v323
          %v338 = vunpack.c.l.s4 1983009808
          %v339 = vunpack.c.0.s8 %v338
          %v340 = vlaneseq
          %v341 = vshrl.u32 %v340, 7
          %v342 = vsub.s32 %v339, %v341
          %v343 = vrot.slane %v336, %v342
          %v344 = vcombine.low %v324, %v326
          %v346 = vunpack.c.l.s4 1983009808
          %v347 = vunpack.c.0.s8 %v346
          %v348 = vlaneseq
          %v349 = vshrl.u32 %v348, 7
          %v350 = vsub.s32 %v347, %v349
          %v351 = vrot.slane %v344, %v350
          %v352 = vcombine.low %v325, %v327
          %v354 = vunpack.c.l.s4 1983009808
          %v355 = vunpack.c.0.s8 %v354
          %v356 = vlaneseq
          %v357 = vshrl.u32 %v356, 7
          %v358 = vsub.s32 %v355, %v357
          %v359 = vrot.slane %v352, %v358
          %v360 = vcombine.low %v335, %v343
          %v361 = vcombine.high %v335, %v343
          %v363 = vunpack.c.l.s4 1934713408
          %v364 = vunpack.c.0.s8 %v363
          %v365 = vlaneseq
          %v366 = vshrl.u32 %v365, 7
          %v367 = vsub.s32 %v364, %v366
          %v368 = vrot.slane %v360, %v367
          %v370 = vunpack.c.l.s4 1934713408
          %v371 = vunpack.c.0.s8 %v370
          %v372 = vlaneseq
          %v373 = vshrl.u32 %v372, 7
          %v374 = vsub.s32 %v371, %v373
          %v375 = vrot.slane %v361, %v374
          %v376 = vcombine.low %v351, %v359
          %v377 = vcombine.high %v351, %v359
          %v379 = vunpack.c.l.s4 1934713408
          %v380 = vunpack.c.0.s8 %v379
          %v381 = vlaneseq
          %v382 = vshrl.u32 %v381, 7
          %v383 = vsub.s32 %v380, %v382
          %v384 = vrot.slane %v376, %v383
          %v386 = vunpack.c.l.s4 1934713408
          %v387 = vunpack.c.0.s8 %v386
          %v388 = vlaneseq
          %v389 = vshrl.u32 %v388, 7
          %v390 = vsub.s32 %v387, %v389
          %v391 = vrot.slane %v377, %v390
          %v392 = vcombine.low %v368, %v384
          %v393 = vcombine.high %v368, %v384
          %v394 = vcombine.low %v375, %v391
          %v395 = vcombine.high %v375, %v391
          %v396 = vmul.f32 %v392, 0.35355338
          %v397 = vmul.f32 %v393, 0.35355338
          %v398 = vmul.f32 %v394, 0.35355338
          %v399 = vmul.f32 %v395, 0.35355338
          %400 = vst.msk [vmem:[#allocation2] sm:$0xff] %vm315, %v396
          %401 = vst.msk [vmem:[#allocation2 + $0x8] sm:$0xff] %vm315, %v397
          %402 = vst.msk [vmem:[#allocation2 + $0x10] sm:$0xff] %vm315, %v398
          %403 = vst.msk [vmem:[#allocation2 + $0x18] sm:$0xff] %vm315, %v399
        $region48: #{tpu_custom_call.1} parent=31 // pred_fallthru
          _
        %v404 = vld [vmem:[#allocation2] sm:$0xff]
        %v405 = vld [vmem:[#allocation2 + $0x8] sm:$0xff]
        %v406 = vld [vmem:[#allocation2 + $0x10] sm:$0xff]
        %v407 = vld [vmem:[#allocation2 + $0x18] sm:$0xff]
        %v408 = vld [vmem:[%s257] sm:$0xf]
        %v409 = vld [vmem:[%s257 + $0x4] sm:$0xf]
        %v410 = vld [vmem:[%s257 + $0x8] sm:$0xf]
        %v411 = vld [vmem:[%s257 + $0xc] sm:$0xf]
        %v412 = vld [vmem:[%s257 + $0x10] sm:$0xf]
        %v413 = vld [vmem:[%s257 + $0x14] sm:$0xf]
        %v414 = vld [vmem:[%s257 + $0x18] sm:$0xf]
        %v415 = vld [vmem:[%s257 + $0x1c] sm:$0xf]
        %v416 = vcombine.low %v408, %v410
        %v418 = vunpack.c.l.s4 1983009808
        %v419 = vunpack.c.0.s8 %v418
        %v420 = vlaneseq
        %v421 = vshrl.u32 %v420, 7
        %v422 = vsub.s32 %v419, %v421
        %v423 = vrot.slane %v416, %v422
        %v424 = vcombine.low %v409, %v411
        %v426 = vunpack.c.l.s4 1983009808
        %v427 = vunpack.c.0.s8 %v426
        %v428 = vlaneseq
        %v429 = vshrl.u32 %v428, 7
        %v430 = vsub.s32 %v427, %v429
        %v431 = vrot.slane %v424, %v430
        %v432 = vcombine.low %v412, %v414
        %v434 = vunpack.c.l.s4 1983009808
        %v435 = vunpack.c.0.s8 %v434
        %v436 = vlaneseq
        %v437 = vshrl.u32 %v436, 7
        %v438 = vsub.s32 %v435, %v437
        %v439 = vrot.slane %v432, %v438
        %v440 = vcombine.low %v413, %v415
        %v442 = vunpack.c.l.s4 1983009808
        %v443 = vunpack.c.0.s8 %v442
        %v444 = vlaneseq
        %v445 = vshrl.u32 %v444, 7
        %v446 = vsub.s32 %v443, %v445
        %v447 = vrot.slane %v440, %v446
        %v448 = vcombine.low %v423, %v431
        %v449 = vcombine.high %v423, %v431
        %v451 = vunpack.c.l.s4 1934713408
        %v452 = vunpack.c.0.s8 %v451
        %v453 = vlaneseq
        %v454 = vshrl.u32 %v453, 7
        %v455 = vsub.s32 %v452, %v454
        %v456 = vrot.slane %v448, %v455
        %v458 = vunpack.c.l.s4 1934713408
        %v459 = vunpack.c.0.s8 %v458
        %v460 = vlaneseq
        %v461 = vshrl.u32 %v460, 7
        %v462 = vsub.s32 %v459, %v461
        %v463 = vrot.slane %v449, %v462
        %v464 = vcombine.low %v439, %v447
        %v465 = vcombine.high %v439, %v447
        %v467 = vunpack.c.l.s4 1934713408
        %v468 = vunpack.c.0.s8 %v467
        %v469 = vlaneseq
        %v470 = vshrl.u32 %v469, 7
        %v471 = vsub.s32 %v468, %v470
        %v472 = vrot.slane %v464, %v471
        %v474 = vunpack.c.l.s4 1934713408
        %v475 = vunpack.c.0.s8 %v474
        %v476 = vlaneseq
        %v477 = vshrl.u32 %v476, 7
        %v478 = vsub.s32 %v475, %v477
        %v479 = vrot.slane %v465, %v478
        %v480 = vcombine.low %v456, %v472
        %v481 = vcombine.high %v456, %v472
        %v482 = vcombine.low %v463, %v479
        %v483 = vcombine.high %v463, %v479
        %v484 = vld [vmem:[%s266] sm:$0xf]
        %v485 = vld [vmem:[%s266 + $0x4] sm:$0xf]
        %v486 = vld [vmem:[%s266 + $0x8] sm:$0xf]
        %v487 = vld [vmem:[%s266 + $0xc] sm:$0xf]
        %v488 = vld [vmem:[%s266 + $0x10] sm:$0xf]
        %v489 = vld [vmem:[%s266 + $0x14] sm:$0xf]
        %v490 = vld [vmem:[%s266 + $0x18] sm:$0xf]
        %v491 = vld [vmem:[%s266 + $0x1c] sm:$0xf]
        %v492 = vcombine.low %v484, %v486
        %v494 = vunpack.c.l.s4 1983009808
        %v495 = vunpack.c.0.s8 %v494
        %v496 = vlaneseq
        %v497 = vshrl.u32 %v496, 7
        %v498 = vsub.s32 %v495, %v497
        %v499 = vrot.slane %v492, %v498
        %v500 = vcombine.low %v485, %v487
        %v502 = vunpack.c.l.s4 1983009808
        %v503 = vunpack.c.0.s8 %v502
        %v504 = vlaneseq
        %v505 = vshrl.u32 %v504, 7
        %v506 = vsub.s32 %v503, %v505
        %v507 = vrot.slane %v500, %v506
        %v508 = vcombine.low %v488, %v490
        %v510 = vunpack.c.l.s4 1983009808
        %v511 = vunpack.c.0.s8 %v510
        %v512 = vlaneseq
        %v513 = vshrl.u32 %v512, 7
        %v514 = vsub.s32 %v511, %v513
        %v515 = vrot.slane %v508, %v514
        %v516 = vcombine.low %v489, %v491
        %v518 = vunpack.c.l.s4 1983009808
        %v519 = vunpack.c.0.s8 %v518
        %v520 = vlaneseq
        %v521 = vshrl.u32 %v520, 7
        %v522 = vsub.s32 %v519, %v521
        %v523 = vrot.slane %v516, %v522
        %v524 = vcombine.low %v499, %v507
        %v525 = vcombine.high %v499, %v507
        %v527 = vunpack.c.l.s4 1934713408
        %v528 = vunpack.c.0.s8 %v527
        %v529 = vlaneseq
        %v530 = vshrl.u32 %v529, 7
        %v531 = vsub.s32 %v528, %v530
        %v532 = vrot.slane %v524, %v531
        %v534 = vunpack.c.l.s4 1934713408
        %v535 = vunpack.c.0.s8 %v534
        %v536 = vlaneseq
        %v537 = vshrl.u32 %v536, 7
        %v538 = vsub.s32 %v535, %v537
        %v539 = vrot.slane %v525, %v538
        %v540 = vcombine.low %v515, %v523
        %v541 = vcombine.high %v515, %v523
        %v543 = vunpack.c.l.s4 1934713408
        %v544 = vunpack.c.0.s8 %v543
        %v545 = vlaneseq
        %v546 = vshrl.u32 %v545, 7
        %v547 = vsub.s32 %v544, %v546
        %v548 = vrot.slane %v540, %v547
        %v550 = vunpack.c.l.s4 1934713408
        %v551 = vunpack.c.0.s8 %v550
        %v552 = vlaneseq
        %v553 = vshrl.u32 %v552, 7
        %v554 = vsub.s32 %v551, %v553
        %v555 = vrot.slane %v541, %v554
        %v556 = vcombine.low %v532, %v548
        %v557 = vcombine.high %v532, %v548
        %v558 = vcombine.low %v539, %v555
        %v559 = vcombine.high %v539, %v555
        %vm560 = vcmask 64512
        %v562 = vsel %vm560, %v404, 0
        %v565 = vsel %vm560, %v480, 0
        %567 = vmatprep.subr.mxu0 0.0
        %568 = vmatpush1.xpose.msra.mxu0 %v565
        %569 = vmatprep.subr.mxu0 0.0
        %570 = vmatpush1.xpose.msra.mxu0 0.0
        %571 = vmatprep.subr.mxu0 0.0
        %572 = vmatpush1.xpose.msra.mxu0 0.0
        %573 = vmatprep.subr.mxu0 0.0
        %574 = vmatpush1.xpose.msra.mxu0 0.0
        %575 = vmatprep.subr.mxu0 0.0
        %576 = vmatpush1.xpose.msra.mxu0 0.0
        %577 = vmatprep.subr.mxu0 0.0
        %578 = vmatpush1.xpose.msra.mxu0 0.0
        %579 = vmatprep.subr.mxu0 0.0
        %580 = vmatpush1.xpose.msra.mxu0 0.0
        %581 = vmatprep.subr.mxu0 0.0
        %582 = vmatpush1.xpose.msra.mxu0 0.0
        %583 = vmatprep.subr.mxu0 0.0
        %584 = vmatpush1.xpose.msra.mxu0 0.0
        %585 = vmatprep.subr.mxu0 0.0
        %586 = vmatpush1.xpose.msra.mxu0 0.0
        %587 = vmatprep.subr.mxu0 0.0
        %588 = vmatpush1.xpose.msra.mxu0 0.0
        %589 = vmatprep.subr.mxu0 0.0
        %590 = vmatpush1.xpose.msra.mxu0 0.0
        %591 = vmatprep.subr.mxu0 0.0
        %592 = vmatpush1.xpose.msra.mxu0 0.0
        %593 = vmatprep.subr.mxu0 0.0
        %594 = vmatpush1.xpose.msra.mxu0 0.0
        %595 = vmatprep.subr.mxu0 0.0
        %596 = vmatpush1.xpose.msra.mxu0 0.0
        %597 = vmatprep.subr.mxu0 0.0
        %598 = vmatpush1.xpose.msra.mxu0 0.0
        %599 = vmatprep.subr.mxu0 0.0
        %600 = vmatpush1.xpose.msra.mxu0 0.0
        %601 = vmatprep.subr.mxu0 0.0
        %602 = vmatpush1.xpose.msra.mxu0 0.0
        %603 = vmatprep.subr.mxu0 0.0
        %604 = vmatpush1.xpose.msra.mxu0 0.0
        %605 = vmatprep.subr.mxu0 0.0
        %606 = vmatpush1.xpose.msra.mxu0 0.0
        %607 = vmatprep.subr.mxu0 0.0
        %608 = vmatpush1.xpose.msra.mxu0 0.0
        %609 = vmatprep.subr.mxu0 0.0
        %610 = vmatpush1.xpose.msra.mxu0 0.0
        %611 = vmatprep.subr.mxu0 0.0
        %612 = vmatpush1.xpose.msra.mxu0 0.0
        %613 = vmatprep.subr.mxu0 0.0
        %614 = vmatpush1.xpose.msra.mxu0 0.0
        %615 = vmatprep.subr.mxu0 0.0
        %616 = vmatpush1.xpose.msra.mxu0 0.0
        %617 = vmatprep.subr.mxu0 0.0
        %618 = vmatpush1.xpose.msra.mxu0 0.0
        %619 = vmatprep.subr.mxu0 0.0
        %620 = vmatpush1.xpose.msra.mxu0 0.0
        %621 = vmatprep.subr.mxu0 0.0
        %622 = vmatpush1.xpose.msra.mxu0 0.0
        %623 = vmatprep.subr.mxu0 0.0
        %624 = vmatpush1.xpose.msra.mxu0 0.0
        %625 = vmatprep.subr.mxu0 0.0
        %626 = vmatpush1.xpose.msra.mxu0 0.0
        %627 = vmatprep.subr.mxu0 0.0
        %628 = vmatpush1.xpose.msra.mxu0 0.0
        %629 = vmatprep.subr.mxu0 0.0
        %630 = vmatpush1.xpose.msra.mxu0 0.0
        %631 = vmatprep.mubr.f32.mxu0 0.0
        %632 = vmatmul.mubr.f32.gmra.mrb[0].mxu0 %v562
        %v633 = vpop.f32.mrb[0].mxu0
        %v634 = vadd.f32 0.0, %v633
        %v635 = vpop.f32.mrb[0].mxu0
        %636 = vdwg.mxu0
        %v638 = vsel %vm560, %v405, 0
        %v641 = vsel %vm560, %v481, 0
        %643 = vmatprep.subr.mxu0 0.0
        %644 = vmatpush1.xpose.msra.mxu0 %v641
        %645 = vmatprep.subr.mxu0 0.0
        %646 = vmatpush1.xpose.msra.mxu0 0.0
        %647 = vmatprep.subr.mxu0 0.0
        %648 = vmatpush1.xpose.msra.mxu0 0.0
        %649 = vmatprep.subr.mxu0 0.0
        %650 = vmatpush1.xpose.msra.mxu0 0.0
        %651 = vmatprep.subr.mxu0 0.0
        %652 = vmatpush1.xpose.msra.mxu0 0.0
        %653 = vmatprep.subr.mxu0 0.0
        %654 = vmatpush1.xpose.msra.mxu0 0.0
        %655 = vmatprep.subr.mxu0 0.0
        %656 = vmatpush1.xpose.msra.mxu0 0.0
        %657 = vmatprep.subr.mxu0 0.0
        %658 = vmatpush1.xpose.msra.mxu0 0.0
        %659 = vmatprep.subr.mxu0 0.0
        %660 = vmatpush1.xpose.msra.mxu0 0.0
        %661 = vmatprep.subr.mxu0 0.0
        %662 = vmatpush1.xpose.msra.mxu0 0.0
        %663 = vmatprep.subr.mxu0 0.0
        %664 = vmatpush1.xpose.msra.mxu0 0.0
        %665 = vmatprep.subr.mxu0 0.0
        %666 = vmatpush1.xpose.msra.mxu0 0.0
        %667 = vmatprep.subr.mxu0 0.0
        %668 = vmatpush1.xpose.msra.mxu0 0.0
        %669 = vmatprep.subr.mxu0 0.0
        %670 = vmatpush1.xpose.msra.mxu0 0.0
        %671 = vmatprep.subr.mxu0 0.0
        %672 = vmatpush1.xpose.msra.mxu0 0.0
        %673 = vmatprep.subr.mxu0 0.0
        %674 = vmatpush1.xpose.msra.mxu0 0.0
        %675 = vmatprep.subr.mxu0 0.0
        %676 = vmatpush1.xpose.msra.mxu0 0.0
        %677 = vmatprep.subr.mxu0 0.0
        %678 = vmatpush1.xpose.msra.mxu0 0.0
        %679 = vmatprep.subr.mxu0 0.0
        %680 = vmatpush1.xpose.msra.mxu0 0.0
        %681 = vmatprep.subr.mxu0 0.0
        %682 = vmatpush1.xpose.msra.mxu0 0.0
        %683 = vmatprep.subr.mxu0 0.0
        %684 = vmatpush1.xpose.msra.mxu0 0.0
        %685 = vmatprep.subr.mxu0 0.0
        %686 = vmatpush1.xpose.msra.mxu0 0.0
        %687 = vmatprep.subr.mxu0 0.0
        %688 = vmatpush1.xpose.msra.mxu0 0.0
        %689 = vmatprep.subr.mxu0 0.0
        %690 = vmatpush1.xpose.msra.mxu0 0.0
        %691 = vmatprep.subr.mxu0 0.0
        %692 = vmatpush1.xpose.msra.mxu0 0.0
        %693 = vmatprep.subr.mxu0 0.0
        %694 = vmatpush1.xpose.msra.mxu0 0.0
        %695 = vmatprep.subr.mxu0 0.0
        %696 = vmatpush1.xpose.msra.mxu0 0.0
        %697 = vmatprep.subr.mxu0 0.0
        %698 = vmatpush1.xpose.msra.mxu0 0.0
        %699 = vmatprep.subr.mxu0 0.0
        %700 = vmatpush1.xpose.msra.mxu0 0.0
        %701 = vmatprep.subr.mxu0 0.0
        %702 = vmatpush1.xpose.msra.mxu0 0.0
        %703 = vmatprep.subr.mxu0 0.0
        %704 = vmatpush1.xpose.msra.mxu0 0.0
        %705 = vmatprep.subr.mxu0 0.0
        %706 = vmatpush1.xpose.msra.mxu0 0.0
        %707 = vmatprep.mubr.f32.mxu0 0.0
        %708 = vmatmul.mubr.f32.gmra.mrb[0].mxu0 %v638
        %v709 = vpop.f32.mrb[0].mxu0
        %v710 = vadd.f32 0.0, %v709
        %v711 = vpop.f32.mrb[0].mxu0
        %712 = vdwg.mxu0
        %v714 = vsel %vm560, %v406, 0
        %v717 = vsel %vm560, %v482, 0
        %719 = vmatprep.subr.mxu0 0.0
        %720 = vmatpush1.xpose.msra.mxu0 %v717
        %721 = vmatprep.subr.mxu0 0.0
        %722 = vmatpush1.xpose.msra.mxu0 0.0
        %723 = vmatprep.subr.mxu0 0.0
        %724 = vmatpush1.xpose.msra.mxu0 0.0
        %725 = vmatprep.subr.mxu0 0.0
        %726 = vmatpush1.xpose.msra.mxu0 0.0
        %727 = vmatprep.subr.mxu0 0.0
        %728 = vmatpush1.xpose.msra.mxu0 0.0
        %729 = vmatprep.subr.mxu0 0.0
        %730 = vmatpush1.xpose.msra.mxu0 0.0
        %731 = vmatprep.subr.mxu0 0.0
        %732 = vmatpush1.xpose.msra.mxu0 0.0
        %733 = vmatprep.subr.mxu0 0.0
        %734 = vmatpush1.xpose.msra.mxu0 0.0
        %735 = vmatprep.subr.mxu0 0.0
        %736 = vmatpush1.xpose.msra.mxu0 0.0
        %737 = vmatprep.subr.mxu0 0.0
        %738 = vmatpush1.xpose.msra.mxu0 0.0
        %739 = vmatprep.subr.mxu0 0.0
        %740 = vmatpush1.xpose.msra.mxu0 0.0
        %741 = vmatprep.subr.mxu0 0.0
        %742 = vmatpush1.xpose.msra.mxu0 0.0
        %743 = vmatprep.subr.mxu0 0.0
        %744 = vmatpush1.xpose.msra.mxu0 0.0
        %745 = vmatprep.subr.mxu0 0.0
        %746 = vmatpush1.xpose.msra.mxu0 0.0
        %747 = vmatprep.subr.mxu0 0.0
        %748 = vmatpush1.xpose.msra.mxu0 0.0
        %749 = vmatprep.subr.mxu0 0.0
        %750 = vmatpush1.xpose.msra.mxu0 0.0
        %751 = vmatprep.subr.mxu0 0.0
        %752 = vmatpush1.xpose.msra.mxu0 0.0
        %753 = vmatprep.subr.mxu0 0.0
        %754 = vmatpush1.xpose.msra.mxu0 0.0
        %755 = vmatprep.subr.mxu0 0.0
        %756 = vmatpush1.xpose.msra.mxu0 0.0
        %757 = vmatprep.subr.mxu0 0.0
        %758 = vmatpush1.xpose.msra.mxu0 0.0
        %759 = vmatprep.subr.mxu0 0.0
        %760 = vmatpush1.xpose.msra.mxu0 0.0
        %761 = vmatprep.subr.mxu0 0.0
        %762 = vmatpush1.xpose.msra.mxu0 0.0
        %763 = vmatprep.subr.mxu0 0.0
        %764 = vmatpush1.xpose.msra.mxu0 0.0
        %765 = vmatprep.subr.mxu0 0.0
        %766 = vmatpush1.xpose.msra.mxu0 0.0
        %767 = vmatprep.subr.mxu0 0.0
        %768 = vmatpush1.xpose.msra.mxu0 0.0
        %769 = vmatprep.subr.mxu0 0.0
        %770 = vmatpush1.xpose.msra.mxu0 0.0
        %771 = vmatprep.subr.mxu0 0.0
        %772 = vmatpush1.xpose.msra.mxu0 0.0
        %773 = vmatprep.subr.mxu0 0.0
        %774 = vmatpush1.xpose.msra.mxu0 0.0
        %775 = vmatprep.subr.mxu0 0.0
        %776 = vmatpush1.xpose.msra.mxu0 0.0
        %777 = vmatprep.subr.mxu0 0.0
        %778 = vmatpush1.xpose.msra.mxu0 0.0
        %779 = vmatprep.subr.mxu0 0.0
        %780 = vmatpush1.xpose.msra.mxu0 0.0
        %781 = vmatprep.subr.mxu0 0.0
        %782 = vmatpush1.xpose.msra.mxu0 0.0
        %783 = vmatprep.mubr.f32.mxu0 0.0
        %784 = vmatmul.mubr.f32.gmra.mrb[0].mxu0 %v714
        %v785 = vpop.f32.mrb[0].mxu0
        %v786 = vadd.f32 0.0, %v785
        %v787 = vpop.f32.mrb[0].mxu0
        %788 = vdwg.mxu0
        %v790 = vsel %vm560, %v407, 0
        %v793 = vsel %vm560, %v483, 0
        %795 = vmatprep.subr.mxu0 0.0
        %796 = vmatpush1.xpose.msra.mxu0 %v793
        %797 = vmatprep.subr.mxu0 0.0
        %798 = vmatpush1.xpose.msra.mxu0 0.0
        %799 = vmatprep.subr.mxu0 0.0
        %800 = vmatpush1.xpose.msra.mxu0 0.0
        %801 = vmatprep.subr.mxu0 0.0
        %802 = vmatpush1.xpose.msra.mxu0 0.0
        %803 = vmatprep.subr.mxu0 0.0
        %804 = vmatpush1.xpose.msra.mxu0 0.0
        %805 = vmatprep.subr.mxu0 0.0
        %806 = vmatpush1.xpose.msra.mxu0 0.0
        %807 = vmatprep.subr.mxu0 0.0
        %808 = vmatpush1.xpose.msra.mxu0 0.0
        %809 = vmatprep.subr.mxu0 0.0
        %810 = vmatpush1.xpose.msra.mxu0 0.0
        %811 = vmatprep.subr.mxu0 0.0
        %812 = vmatpush1.xpose.msra.mxu0 0.0
        %813 = vmatprep.subr.mxu0 0.0
        %814 = vmatpush1.xpose.msra.mxu0 0.0
        %815 = vmatprep.subr.mxu0 0.0
        %816 = vmatpush1.xpose.msra.mxu0 0.0
        %817 = vmatprep.subr.mxu0 0.0
        %818 = vmatpush1.xpose.msra.mxu0 0.0
        %819 = vmatprep.subr.mxu0 0.0
        %820 = vmatpush1.xpose.msra.mxu0 0.0
        %821 = vmatprep.subr.mxu0 0.0
        %822 = vmatpush1.xpose.msra.mxu0 0.0
        %823 = vmatprep.subr.mxu0 0.0
        %824 = vmatpush1.xpose.msra.mxu0 0.0
        %825 = vmatprep.subr.mxu0 0.0
        %826 = vmatpush1.xpose.msra.mxu0 0.0
        %827 = vmatprep.subr.mxu0 0.0
        %828 = vmatpush1.xpose.msra.mxu0 0.0
        %829 = vmatprep.subr.mxu0 0.0
        %830 = vmatpush1.xpose.msra.mxu0 0.0
        %831 = vmatprep.subr.mxu0 0.0
        %832 = vmatpush1.xpose.msra.mxu0 0.0
        %833 = vmatprep.subr.mxu0 0.0
        %834 = vmatpush1.xpose.msra.mxu0 0.0
        %835 = vmatprep.subr.mxu0 0.0
        %836 = vmatpush1.xpose.msra.mxu0 0.0
        %837 = vmatprep.subr.mxu0 0.0
        %838 = vmatpush1.xpose.msra.mxu0 0.0
        %839 = vmatprep.subr.mxu0 0.0
        %840 = vmatpush1.xpose.msra.mxu0 0.0
        %841 = vmatprep.subr.mxu0 0.0
        %842 = vmatpush1.xpose.msra.mxu0 0.0
        %843 = vmatprep.subr.mxu0 0.0
        %844 = vmatpush1.xpose.msra.mxu0 0.0
        %845 = vmatprep.subr.mxu0 0.0
        %846 = vmatpush1.xpose.msra.mxu0 0.0
        %847 = vmatprep.subr.mxu0 0.0
        %848 = vmatpush1.xpose.msra.mxu0 0.0
        %849 = vmatprep.subr.mxu0 0.0
        %850 = vmatpush1.xpose.msra.mxu0 0.0
        %851 = vmatprep.subr.mxu0 0.0
        %852 = vmatpush1.xpose.msra.mxu0 0.0
        %853 = vmatprep.subr.mxu0 0.0
        %854 = vmatpush1.xpose.msra.mxu0 0.0
        %855 = vmatprep.subr.mxu0 0.0
        %856 = vmatpush1.xpose.msra.mxu0 0.0
        %857 = vmatprep.subr.mxu0 0.0
        %858 = vmatpush1.xpose.msra.mxu0 0.0
        %859 = vmatprep.mubr.f32.mxu0 0.0
        %860 = vmatmul.mubr.f32.gmra.mrb[0].mxu0 %v790
        %v861 = vpop.f32.mrb[0].mxu0
        %v862 = vadd.f32 0.0, %v861
        %v863 = vpop.f32.mrb[0].mxu0
        %864 = vdwg.mxu0
        %v865 = vld [vmem:[#allocation3] sm:$0xff]
        %v866 = vld [vmem:[#allocation3 + $0x8] sm:$0xff]
        %v867 = vld [vmem:[#allocation3 + $0x10] sm:$0xff]
        %v868 = vld [vmem:[#allocation3 + $0x18] sm:$0xff]
        %v869 = vsel %vm560, %v634, -inf
        %870 = vmax.xlane.f32.xlu0 %v869
        %v871 = vpop.xlane.xlu0 %870
        %v872 = vsel %vm560, %v710, -inf
        %873 = vmax.xlane.f32.xlu0 %v872
        %v874 = vpop.xlane.xlu0 %873
        %v875 = vsel %vm560, %v786, -inf
        %876 = vmax.xlane.f32.xlu0 %v875
        %v877 = vpop.xlane.xlu0 %876
        %v878 = vsel %vm560, %v862, -inf
        %879 = vmax.xlane.f32.xlu0 %v878
        %v880 = vpop.xlane.xlu0 %879
        %v881 = vmax.f32 %v865, %v871
        %v882 = vmax.f32 %v866, %v874
        %v883 = vmax.f32 %v867, %v877
        %v884 = vmax.f32 %v868, %v880
        %v885 = vsub.f32 %v865, %v881
        %v886 = vsub.f32 %v866, %v882
        %v887 = vsub.f32 %v867, %v883
        %v888 = vsub.f32 %v868, %v884
        %v889 = vmul.f32 %v885, 1.442695
        %v890 = vpow.pop %v889
        %v891 = vmul.f32 %v886, 1.442695
        %v892 = vpow.pop %v891
        %v893 = vmul.f32 %v887, 1.442695
        %v894 = vpow.pop %v893
        %v895 = vmul.f32 %v888, 1.442695
        %v896 = vpow.pop %v895
        %898 = vset.pattern.permute.xlu0 0
        %899 = vperm.xlu0 %898, %v881
        %v900 = vpop.permute.xlu0 %899
        %903 = vset.pattern.permute.xlu0 0
        %904 = vperm.xlu0 %903, %v882
        %v905 = vpop.permute.xlu0 %904
        %908 = vset.pattern.permute.xlu0 0
        %909 = vperm.xlu0 %908, %v883
        %v910 = vpop.permute.xlu0 %909
        %913 = vset.pattern.permute.xlu0 0
        %914 = vperm.xlu0 %913, %v884
        %v915 = vpop.permute.xlu0 %914
        %v917 = vsub.f32 %v634, %v900
        %v918 = vsub.f32 %v710, %v905
        %v919 = vsub.f32 %v786, %v910
        %v920 = vsub.f32 %v862, %v915
        %v921 = vmul.f32 %v917, 1.442695
        %v922 = vpow.pop %v921
        %v923 = vmul.f32 %v918, 1.442695
        %v924 = vpow.pop %v923
        %v925 = vmul.f32 %v919, 1.442695
        %v926 = vpow.pop %v925
        %v927 = vmul.f32 %v920, 1.442695
        %v928 = vpow.pop %v927
        %v929 = vld [vmem:[#allocation4] sm:$0xff]
        %v930 = vld [vmem:[#allocation4 + $0x8] sm:$0xff]
        %v931 = vld [vmem:[#allocation4 + $0x10] sm:$0xff]
        %v932 = vld [vmem:[#allocation4 + $0x18] sm:$0xff]
        %v933 = vmul.f32 %v890, %v929
        %v934 = vmul.f32 %v892, %v930
        %v935 = vmul.f32 %v894, %v931
        %v936 = vmul.f32 %v896, %v932
        %v937 = vsel %vm560, %v922, 0.0
        %938 = vadd.xlane.f32.xlu0 %v937
        %v939 = vpop.xlane.xlu0 %938
        %v940 = vsel %vm560, %v924, 0.0
        %941 = vadd.xlane.f32.xlu0 %v940
        %v942 = vpop.xlane.xlu0 %941
        %v943 = vsel %vm560, %v926, 0.0
        %944 = vadd.xlane.f32.xlu0 %v943
        %v945 = vpop.xlane.xlu0 %944
        %v946 = vsel %vm560, %v928, 0.0
        %947 = vadd.xlane.f32.xlu0 %v946
        %v948 = vpop.xlane.xlu0 %947
        %v949 = vadd.f32 %v933, %v939
        %v950 = vadd.f32 %v934, %v942
        %v951 = vadd.f32 %v935, %v945
        %v952 = vadd.f32 %v936, %v948
        %vm953 = vcmask 7168
        %954 = vst.msk [vmem:[#allocation4] sm:$0xff] %vm953, %v949
        %955 = vst.msk [vmem:[#allocation4 + $0x8] sm:$0xff] %vm953, %v950
        %956 = vst.msk [vmem:[#allocation4 + $0x10] sm:$0xff] %vm953, %v951
        %957 = vst.msk [vmem:[#allocation4 + $0x18] sm:$0xff] %vm953, %v952
        %v959 = vsel %vm560, %v922, 0
        %961 = vmatprep.subr.mxu0 0.0
        %962 = vmatpush1.msra.mxu0 %v556
        %963 = vmatprep.subr.mxu0 0.0
        %964 = vmatpush1.msra.mxu0 0.0
        %965 = vmatprep.subr.mxu0 0.0
        %966 = vmatpush1.msra.mxu0 0.0
        %967 = vmatprep.subr.mxu0 0.0
        %968 = vmatpush1.msra.mxu0 0.0
        %969 = vmatprep.subr.mxu0 0.0
        %970 = vmatpush1.msra.mxu0 0.0
        %971 = vmatprep.subr.mxu0 0.0
        %972 = vmatpush1.msra.mxu0 0.0
        %973 = vmatprep.subr.mxu0 0.0
        %974 = vmatpush1.msra.mxu0 0.0
        %975 = vmatprep.subr.mxu0 0.0
        %976 = vmatpush1.msra.mxu0 0.0
        %977 = vmatprep.subr.mxu0 0.0
        %978 = vmatpush1.msra.mxu0 0.0
        %979 = vmatprep.subr.mxu0 0.0
        %980 = vmatpush1.msra.mxu0 0.0
        %981 = vmatprep.subr.mxu0 0.0
        %982 = vmatpush1.msra.mxu0 0.0
        %983 = vmatprep.subr.mxu0 0.0
        %984 = vmatpush1.msra.mxu0 0.0
        %985 = vmatprep.subr.mxu0 0.0
        %986 = vmatpush1.msra.mxu0 0.0
        %987 = vmatprep.subr.mxu0 0.0
        %988 = vmatpush1.msra.mxu0 0.0
        %989 = vmatprep.subr.mxu0 0.0
        %990 = vmatpush1.msra.mxu0 0.0
        %991 = vmatprep.subr.mxu0 0.0
        %992 = vmatpush1.msra.mxu0 0.0
        %993 = vmatprep.subr.mxu0 0.0
        %994 = vmatpush1.msra.mxu0 0.0
        %995 = vmatprep.subr.mxu0 0.0
        %996 = vmatpush1.msra.mxu0 0.0
        %997 = vmatprep.subr.mxu0 0.0
        %998 = vmatpush1.msra.mxu0 0.0
        %999 = vmatprep.subr.mxu0 0.0
        %1000 = vmatpush1.msra.mxu0 0.0
        %1001 = vmatprep.subr.mxu0 0.0
        %1002 = vmatpush1.msra.mxu0 0.0
        %1003 = vmatprep.subr.mxu0 0.0
        %1004 = vmatpush1.msra.mxu0 0.0
        %1005 = vmatprep.subr.mxu0 0.0
        %1006 = vmatpush1.msra.mxu0 0.0
        %1007 = vmatprep.subr.mxu0 0.0
        %1008 = vmatpush1.msra.mxu0 0.0
        %1009 = vmatprep.subr.mxu0 0.0
        %1010 = vmatpush1.msra.mxu0 0.0
        %1011 = vmatprep.subr.mxu0 0.0
        %1012 = vmatpush1.msra.mxu0 0.0
        %1013 = vmatprep.subr.mxu0 0.0
        %1014 = vmatpush1.msra.mxu0 0.0
        %1015 = vmatprep.subr.mxu0 0.0
        %1016 = vmatpush1.msra.mxu0 0.0
        %1017 = vmatprep.subr.mxu0 0.0
        %1018 = vmatpush1.msra.mxu0 0.0
        %1019 = vmatprep.subr.mxu0 0.0
        %1020 = vmatpush1.msra.mxu0 0.0
        %1021 = vmatprep.subr.mxu0 0.0
        %1022 = vmatpush1.msra.mxu0 0.0
        %1023 = vmatprep.subr.mxu0 0.0
        %1024 = vmatpush1.msra.mxu0 0.0
        %1025 = vmatprep.mubr.f32.mxu0 0.0
        %1026 = vmatmul.mubr.f32.gmra.mrb[0].mxu0 %v959
        %v1027 = vpop.f32.mrb[0].mxu0
        %v1028 = vadd.f32 0.0, %v1027
        %v1029 = vpop.f32.mrb[0].mxu0
        %1030 = vdwg.mxu0
        %v1032 = vsel %vm560, %v924, 0
        %1034 = vmatprep.subr.mxu0 0.0
        %1035 = vmatpush1.msra.mxu0 %v557
        %1036 = vmatprep.subr.mxu0 0.0
        %1037 = vmatpush1.msra.mxu0 0.0
        %1038 = vmatprep.subr.mxu0 0.0
        %1039 = vmatpush1.msra.mxu0 0.0
        %1040 = vmatprep.subr.mxu0 0.0
        %1041 = vmatpush1.msra.mxu0 0.0
        %1042 = vmatprep.subr.mxu0 0.0
        %1043 = vmatpush1.msra.mxu0 0.0
        %1044 = vmatprep.subr.mxu0 0.0
        %1045 = vmatpush1.msra.mxu0 0.0
        %1046 = vmatprep.subr.mxu0 0.0
        %1047 = vmatpush1.msra.mxu0 0.0
        %1048 = vmatprep.subr.mxu0 0.0
        %1049 = vmatpush1.msra.mxu0 0.0
        %1050 = vmatprep.subr.mxu0 0.0
        %1051 = vmatpush1.msra.mxu0 0.0
        %1052 = vmatprep.subr.mxu0 0.0
        %1053 = vmatpush1.msra.mxu0 0.0
        %1054 = vmatprep.subr.mxu0 0.0
        %1055 = vmatpush1.msra.mxu0 0.0
        %1056 = vmatprep.subr.mxu0 0.0
        %1057 = vmatpush1.msra.mxu0 0.0
        %1058 = vmatprep.subr.mxu0 0.0
        %1059 = vmatpush1.msra.mxu0 0.0
        %1060 = vmatprep.subr.mxu0 0.0
        %1061 = vmatpush1.msra.mxu0 0.0
        %1062 = vmatprep.subr.mxu0 0.0
        %1063 = vmatpush1.msra.mxu0 0.0
        %1064 = vmatprep.subr.mxu0 0.0
        %1065 = vmatpush1.msra.mxu0 0.0
        %1066 = vmatprep.subr.mxu0 0.0
        %1067 = vmatpush1.msra.mxu0 0.0
        %1068 = vmatprep.subr.mxu0 0.0
        %1069 = vmatpush1.msra.mxu0 0.0
        %1070 = vmatprep.subr.mxu0 0.0
        %1071 = vmatpush1.msra.mxu0 0.0
        %1072 = vmatprep.subr.mxu0 0.0
        %1073 = vmatpush1.msra.mxu0 0.0
        %1074 = vmatprep.subr.mxu0 0.0
        %1075 = vmatpush1.msra.mxu0 0.0
        %1076 = vmatprep.subr.mxu0 0.0
        %1077 = vmatpush1.msra.mxu0 0.0
        %1078 = vmatprep.subr.mxu0 0.0
        %1079 = vmatpush1.msra.mxu0 0.0
        %1080 = vmatprep.subr.mxu0 0.0
        %1081 = vmatpush1.msra.mxu0 0.0
        %1082 = vmatprep.subr.mxu0 0.0
        %1083 = vmatpush1.msra.mxu0 0.0
        %1084 = vmatprep.subr.mxu0 0.0
        %1085 = vmatpush1.msra.mxu0 0.0
        %1086 = vmatprep.subr.mxu0 0.0
        %1087 = vmatpush1.msra.mxu0 0.0
        %1088 = vmatprep.subr.mxu0 0.0
        %1089 = vmatpush1.msra.mxu0 0.0
        %1090 = vmatprep.subr.mxu0 0.0
        %1091 = vmatpush1.msra.mxu0 0.0
        %1092 = vmatprep.subr.mxu0 0.0
        %1093 = vmatpush1.msra.mxu0 0.0
        %1094 = vmatprep.subr.mxu0 0.0
        %1095 = vmatpush1.msra.mxu0 0.0
        %1096 = vmatprep.subr.mxu0 0.0
        %1097 = vmatpush1.msra.mxu0 0.0
        %1098 = vmatprep.mubr.f32.mxu0 0.0
        %1099 = vmatmul.mubr.f32.gmra.mrb[0].mxu0 %v1032
        %v1100 = vpop.f32.mrb[0].mxu0
        %v1101 = vadd.f32 0.0, %v1100
        %v1102 = vpop.f32.mrb[0].mxu0
        %1103 = vdwg.mxu0
        %v1105 = vsel %vm560, %v926, 0
        %1107 = vmatprep.subr.mxu0 0.0
        %1108 = vmatpush1.msra.mxu0 %v558
        %1109 = vmatprep.subr.mxu0 0.0
        %1110 = vmatpush1.msra.mxu0 0.0
        %1111 = vmatprep.subr.mxu0 0.0
        %1112 = vmatpush1.msra.mxu0 0.0
        %1113 = vmatprep.subr.mxu0 0.0
        %1114 = vmatpush1.msra.mxu0 0.0
        %1115 = vmatprep.subr.mxu0 0.0
        %1116 = vmatpush1.msra.mxu0 0.0
        %1117 = vmatprep.subr.mxu0 0.0
        %1118 = vmatpush1.msra.mxu0 0.0
        %1119 = vmatprep.subr.mxu0 0.0
        %1120 = vmatpush1.msra.mxu0 0.0
        %1121 = vmatprep.subr.mxu0 0.0
        %1122 = vmatpush1.msra.mxu0 0.0
        %1123 = vmatprep.subr.mxu0 0.0
        %1124 = vmatpush1.msra.mxu0 0.0
        %1125 = vmatprep.subr.mxu0 0.0
        %1126 = vmatpush1.msra.mxu0 0.0
        %1127 = vmatprep.subr.mxu0 0.0
        %1128 = vmatpush1.msra.mxu0 0.0
        %1129 = vmatprep.subr.mxu0 0.0
        %1130 = vmatpush1.msra.mxu0 0.0
        %1131 = vmatprep.subr.mxu0 0.0
        %1132 = vmatpush1.msra.mxu0 0.0
        %1133 = vmatprep.subr.mxu0 0.0
        %1134 = vmatpush1.msra.mxu0 0.0
        %1135 = vmatprep.subr.mxu0 0.0
        %1136 = vmatpush1.msra.mxu0 0.0
        %1137 = vmatprep.subr.mxu0 0.0
        %1138 = vmatpush1.msra.mxu0 0.0
        %1139 = vmatprep.subr.mxu0 0.0
        %1140 = vmatpush1.msra.mxu0 0.0
        %1141 = vmatprep.subr.mxu0 0.0
        %1142 = vmatpush1.msra.mxu0 0.0
        %1143 = vmatprep.subr.mxu0 0.0
        %1144 = vmatpush1.msra.mxu0 0.0
        %1145 = vmatprep.subr.mxu0 0.0
        %1146 = vmatpush1.msra.mxu0 0.0
        %1147 = vmatprep.subr.mxu0 0.0
        %1148 = vmatpush1.msra.mxu0 0.0
        %1149 = vmatprep.subr.mxu0 0.0
        %1150 = vmatpush1.msra.mxu0 0.0
        %1151 = vmatprep.subr.mxu0 0.0
        %1152 = vmatpush1.msra.mxu0 0.0
        %1153 = vmatprep.subr.mxu0 0.0
        %1154 = vmatpush1.msra.mxu0 0.0
        %1155 = vmatprep.subr.mxu0 0.0
        %1156 = vmatpush1.msra.mxu0 0.0
        %1157 = vmatprep.subr.mxu0 0.0
        %1158 = vmatpush1.msra.mxu0 0.0
        %1159 = vmatprep.subr.mxu0 0.0
        %1160 = vmatpush1.msra.mxu0 0.0
        %1161 = vmatprep.subr.mxu0 0.0
        %1162 = vmatpush1.msra.mxu0 0.0
        %1163 = vmatprep.subr.mxu0 0.0
        %1164 = vmatpush1.msra.mxu0 0.0
        %1165 = vmatprep.subr.mxu0 0.0
        %1166 = vmatpush1.msra.mxu0 0.0
        %1167 = vmatprep.subr.mxu0 0.0
        %1168 = vmatpush1.msra.mxu0 0.0
        %1169 = vmatprep.subr.mxu0 0.0
        %1170 = vmatpush1.msra.mxu0 0.0
        %1171 = vmatprep.mubr.f32.mxu0 0.0
        %1172 = vmatmul.mubr.f32.gmra.mrb[0].mxu0 %v1105
        %v1173 = vpop.f32.mrb[0].mxu0
        %v1174 = vadd.f32 0.0, %v1173
        %v1175 = vpop.f32.mrb[0].mxu0
        %1176 = vdwg.mxu0
        %v1178 = vsel %vm560, %v928, 0
        %1180 = vmatprep.subr.mxu0 0.0
        %1181 = vmatpush1.msra.mxu0 %v559
        %1182 = vmatprep.subr.mxu0 0.0
        %1183 = vmatpush1.msra.mxu0 0.0
        %1184 = vmatprep.subr.mxu0 0.0
        %1185 = vmatpush1.msra.mxu0 0.0
        %1186 = vmatprep.subr.mxu0 0.0
        %1187 = vmatpush1.msra.mxu0 0.0
        %1188 = vmatprep.subr.mxu0 0.0
        %1189 = vmatpush1.msra.mxu0 0.0
        %1190 = vmatprep.subr.mxu0 0.0
        %1191 = vmatpush1.msra.mxu0 0.0
        %1192 = vmatprep.subr.mxu0 0.0
        %1193 = vmatpush1.msra.mxu0 0.0
        %1194 = vmatprep.subr.mxu0 0.0
        %1195 = vmatpush1.msra.mxu0 0.0
        %1196 = vmatprep.subr.mxu0 0.0
        %1197 = vmatpush1.msra.mxu0 0.0
        %1198 = vmatprep.subr.mxu0 0.0
        %1199 = vmatpush1.msra.mxu0 0.0
        %1200 = vmatprep.subr.mxu0 0.0
        %1201 = vmatpush1.msra.mxu0 0.0
        %1202 = vmatprep.subr.mxu0 0.0
        %1203 = vmatpush1.msra.mxu0 0.0
        %1204 = vmatprep.subr.mxu0 0.0
        %1205 = vmatpush1.msra.mxu0 0.0
        %1206 = vmatprep.subr.mxu0 0.0
        %1207 = vmatpush1.msra.mxu0 0.0
        %1208 = vmatprep.subr.mxu0 0.0
        %1209 = vmatpush1.msra.mxu0 0.0
        %1210 = vmatprep.subr.mxu0 0.0
        %1211 = vmatpush1.msra.mxu0 0.0
        %1212 = vmatprep.subr.mxu0 0.0
        %1213 = vmatpush1.msra.mxu0 0.0
        %1214 = vmatprep.subr.mxu0 0.0
        %1215 = vmatpush1.msra.mxu0 0.0
        %1216 = vmatprep.subr.mxu0 0.0
        %1217 = vmatpush1.msra.mxu0 0.0
        %1218 = vmatprep.subr.mxu0 0.0
        %1219 = vmatpush1.msra.mxu0 0.0
        %1220 = vmatprep.subr.mxu0 0.0
        %1221 = vmatpush1.msra.mxu0 0.0
        %1222 = vmatprep.subr.mxu0 0.0
        %1223 = vmatpush1.msra.mxu0 0.0
        %1224 = vmatprep.subr.mxu0 0.0
        %1225 = vmatpush1.msra.mxu0 0.0
        %1226 = vmatprep.subr.mxu0 0.0
        %1227 = vmatpush1.msra.mxu0 0.0
        %1228 = vmatprep.subr.mxu0 0.0
        %1229 = vmatpush1.msra.mxu0 0.0
        %1230 = vmatprep.subr.mxu0 0.0
        %1231 = vmatpush1.msra.mxu0 0.0
        %1232 = vmatprep.subr.mxu0 0.0
        %1233 = vmatpush1.msra.mxu0 0.0
        %1234 = vmatprep.subr.mxu0 0.0
        %1235 = vmatpush1.msra.mxu0 0.0
        %1236 = vmatprep.subr.mxu0 0.0
        %1237 = vmatpush1.msra.mxu0 0.0
        %1238 = vmatprep.subr.mxu0 0.0
        %1239 = vmatpush1.msra.mxu0 0.0
        %1240 = vmatprep.subr.mxu0 0.0
        %1241 = vmatpush1.msra.mxu0 0.0
        %1242 = vmatprep.subr.mxu0 0.0
        %1243 = vmatpush1.msra.mxu0 0.0
        %1244 = vmatprep.mubr.f32.mxu0 0.0
        %1245 = vmatmul.mubr.f32.gmra.mrb[0].mxu0 %v1178
        %v1246 = vpop.f32.mrb[0].mxu0
        %v1247 = vadd.f32 0.0, %v1246
        %v1248 = vpop.f32.mrb[0].mxu0
        %1249 = vdwg.mxu0
        %v1250 = vld [vmem:[#allocation5] sm:$0xff]
        %v1251 = vld [vmem:[#allocation5 + $0x8] sm:$0xff]
        %v1252 = vld [vmem:[#allocation5 + $0x10] sm:$0xff]
        %v1253 = vld [vmem:[#allocation5 + $0x18] sm:$0xff]
        %1255 = vset.pattern.permute.xlu0 0
        %1256 = vperm.xlu0 %1255, %v890
        %v1257 = vpop.permute.xlu0 %1256
        %1260 = vset.pattern.permute.xlu0 0
        %1261 = vperm.xlu0 %1260, %v892
        %v1262 = vpop.permute.xlu0 %1261
        %1265 = vset.pattern.permute.xlu0 0
        %1266 = vperm.xlu0 %1265, %v894
        %v1267 = vpop.permute.xlu0 %1266
        %1270 = vset.pattern.permute.xlu0 0
        %1271 = vperm.xlu0 %1270, %v896
        %v1272 = vpop.permute.xlu0 %1271
        %v1274 = vmul.f32 %v1257, %v1250
        %v1275 = vmul.f32 %v1262, %v1251
        %v1276 = vmul.f32 %v1267, %v1252
        %v1277 = vmul.f32 %v1272, %v1253
        %v1278 = vadd.f32 %v1274, %v1028
        %v1279 = vadd.f32 %v1275, %v1101
        %v1280 = vadd.f32 %v1276, %v1174
        %v1281 = vadd.f32 %v1277, %v1247
        %1282 = vst.msk [vmem:[#allocation5] sm:$0xff] %vm560, %v1278
        %1283 = vst.msk [vmem:[#allocation5 + $0x8] sm:$0xff] %vm560, %v1279
        %1284 = vst.msk [vmem:[#allocation5 + $0x10] sm:$0xff] %vm560, %v1280
        %1285 = vst.msk [vmem:[#allocation5 + $0x18] sm:$0xff] %vm560, %v1281
        %1286 = vst.msk [vmem:[#allocation3] sm:$0xff] %vm953, %v881
        %1287 = vst.msk [vmem:[#allocation3 + $0x8] sm:$0xff] %vm953, %v882
        %1288 = vst.msk [vmem:[#allocation3 + $0x10] sm:$0xff] %vm953, %v883
        %1289 = vst.msk [vmem:[#allocation3 + $0x18] sm:$0xff] %vm953, %v884
        // Predicated region
        $region49: #{tpu_custom_call.1} parent=31 // pred_check
          %p1290 = pneg %p302
        $region50: #{tpu_custom_call.1} parent=31 // pred_check_branch
          %1292 = sbr.rel (%p1290) target = $region52
        $region51: #{tpu_custom_call.1} parent=31 // pred_region
          %v1293 = vld [vmem:[#allocation4] sm:$0xff]
          %v1294 = vld [vmem:[#allocation4 + $0x8] sm:$0xff]
          %v1295 = vld [vmem:[#allocation4 + $0x10] sm:$0xff]
          %v1296 = vld [vmem:[#allocation4 + $0x18] sm:$0xff]
          %v1297 = vrcp.pop %v1293
          %v1298 = vrcp.pop %v1294
          %v1299 = vrcp.pop %v1295
          %v1300 = vrcp.pop %v1296
          %v1301 = vld [vmem:[#allocation5] sm:$0xff]
          %v1302 = vld [vmem:[#allocation5 + $0x8] sm:$0xff]
          %v1303 = vld [vmem:[#allocation5 + $0x10] sm:$0xff]
          %v1304 = vld [vmem:[#allocation5 + $0x18] sm:$0xff]
          %1306 = vset.pattern.permute.xlu0 0
          %1307 = vperm.xlu0 %1306, %v1297
          %v1308 = vpop.permute.xlu0 %1307
          %1311 = vset.pattern.permute.xlu0 0
          %1312 = vperm.xlu0 %1311, %v1298
          %v1313 = vpop.permute.xlu0 %1312
          %1316 = vset.pattern.permute.xlu0 0
          %1317 = vperm.xlu0 %1316, %v1299
          %v1318 = vpop.permute.xlu0 %1317
          %1321 = vset.pattern.permute.xlu0 0
          %1322 = vperm.xlu0 %1321, %v1300
          %v1323 = vpop.permute.xlu0 %1322
          %v1325 = vmul.f32 %v1301, %v1308
          %v1326 = vmul.f32 %v1302, %v1313
          %v1327 = vmul.f32 %v1303, %v1318
          %v1328 = vmul.f32 %v1304, %v1323
          %v1329 = vcombine.low %v1325, %v1327
          %v1330 = vcombine.high %v1325, %v1327
          %v1332 = vunpack.c.l.s4 1983009808
          %v1333 = vunpack.c.0.s8 %v1332
          %v1334 = vlaneseq
          %v1335 = vshrl.u32 %v1334, 7
          %v1336 = vsub.s32 %v1333, %v1335
          %v1337 = vrot.slane %v1329, %v1336
          %v1339 = vunpack.c.l.s4 1983009808
          %v1340 = vunpack.c.0.s8 %v1339
          %v1341 = vlaneseq
          %v1342 = vshrl.u32 %v1341, 7
          %v1343 = vsub.s32 %v1340, %v1342
          %v1344 = vrot.slane %v1330, %v1343
          %v1345 = vcombine.low %v1326, %v1328
          %v1346 = vcombine.high %v1326, %v1328
          %v1348 = vunpack.c.l.s4 1983009808
          %v1349 = vunpack.c.0.s8 %v1348
          %v1350 = vlaneseq
          %v1351 = vshrl.u32 %v1350, 7
          %v1352 = vsub.s32 %v1349, %v1351
          %v1353 = vrot.slane %v1345, %v1352
          %v1355 = vunpack.c.l.s4 1983009808
          %v1356 = vunpack.c.0.s8 %v1355
          %v1357 = vlaneseq
          %v1358 = vshrl.u32 %v1357, 7
          %v1359 = vsub.s32 %v1356, %v1358
          %v1360 = vrot.slane %v1346, %v1359
          %v1361 = vcombine.low %v1337, %v1353
          %v1362 = vcombine.high %v1337, %v1353
          %v1364 = vunpack.c.l.s4 1934713408
          %v1365 = vunpack.c.0.s8 %v1364
          %v1366 = vlaneseq
          %v1367 = vshrl.u32 %v1366, 7
          %v1368 = vsub.s32 %v1365, %v1367
          %v1369 = vrot.slane %v1361, %v1368
          %v1371 = vunpack.c.l.s4 1934713408
          %v1372 = vunpack.c.0.s8 %v1371
          %v1373 = vlaneseq
          %v1374 = vshrl.u32 %v1373, 7
          %v1375 = vsub.s32 %v1372, %v1374
          %v1376 = vrot.slane %v1362, %v1375
          %v1377 = vcombine.low %v1344, %v1360
          %v1378 = vcombine.high %v1344, %v1360
          %v1380 = vunpack.c.l.s4 1934713408
          %v1381 = vunpack.c.0.s8 %v1380
          %v1382 = vlaneseq
          %v1383 = vshrl.u32 %v1382, 7
          %v1384 = vsub.s32 %v1381, %v1383
          %v1385 = vrot.slane %v1377, %v1384
          %v1387 = vunpack.c.l.s4 1934713408
          %v1388 = vunpack.c.0.s8 %v1387
          %v1389 = vlaneseq
          %v1390 = vshrl.u32 %v1389, 7
          %v1391 = vsub.s32 %v1388, %v1390
          %v1392 = vrot.slane %v1378, %v1391
          %v1393 = vcombine.high %v1369, 0.0
          %v1394 = vcombine.high %v1376, 0.0
          %v1395 = vcombine.high %v1385, 0.0
          %v1396 = vcombine.high %v1392, 0.0
          %v1397 = vcombine.low %v1369, %v1376
          %v1399 = vunpack.c.l.s4 1983009808
          %v1400 = vunpack.c.0.s8 %v1399
          %v1401 = vlaneseq
          %v1402 = vshrl.u32 %v1401, 7
          %v1403 = vsub.s32 %v1400, %v1402
          %v1404 = vrot.slane %v1397, %v1403
          %v1405 = vcombine.low %v1393, %v1394
          %v1407 = vunpack.c.l.s4 1983009808
          %v1408 = vunpack.c.0.s8 %v1407
          %v1409 = vlaneseq
          %v1410 = vshrl.u32 %v1409, 7
          %v1411 = vsub.s32 %v1408, %v1410
          %v1412 = vrot.slane %v1405, %v1411
          %v1413 = vcombine.low %v1385, %v1392
          %v1415 = vunpack.c.l.s4 1983009808
          %v1416 = vunpack.c.0.s8 %v1415
          %v1417 = vlaneseq
          %v1418 = vshrl.u32 %v1417, 7
          %v1419 = vsub.s32 %v1416, %v1418
          %v1420 = vrot.slane %v1413, %v1419
          %v1421 = vcombine.low %v1395, %v1396
          %v1423 = vunpack.c.l.s4 1983009808
          %v1424 = vunpack.c.0.s8 %v1423
          %v1425 = vlaneseq
          %v1426 = vshrl.u32 %v1425, 7
          %v1427 = vsub.s32 %v1424, %v1426
          %v1428 = vrot.slane %v1421, %v1427
          %v1429 = vcombine.low %v1404, %v1412
          %v1430 = vcombine.high %v1404, %v1412
          %v1432 = vunpack.c.l.s4 1934713408
          %v1433 = vunpack.c.0.s8 %v1432
          %v1434 = vlaneseq
          %v1435 = vshrl.u32 %v1434, 7
          %v1436 = vsub.s32 %v1433, %v1435
          %v1437 = vrot.slane %v1429, %v1436
          %v1439 = vunpack.c.l.s4 1934713408
          %v1440 = vunpack.c.0.s8 %v1439
          %v1441 = vlaneseq
          %v1442 = vshrl.u32 %v1441, 7
          %v1443 = vsub.s32 %v1440, %v1442
          %v1444 = vrot.slane %v1430, %v1443
          %v1445 = vcombine.low %v1420, %v1428
          %v1446 = vcombine.high %v1420, %v1428
          %v1448 = vunpack.c.l.s4 1934713408
          %v1449 = vunpack.c.0.s8 %v1448
          %v1450 = vlaneseq
          %v1451 = vshrl.u32 %v1450, 7
          %v1452 = vsub.s32 %v1449, %v1451
          %v1453 = vrot.slane %v1445, %v1452
          %v1455 = vunpack.c.l.s4 1934713408
          %v1456 = vunpack.c.0.s8 %v1455
          %v1457 = vlaneseq
          %v1458 = vshrl.u32 %v1457, 7
          %v1459 = vsub.s32 %v1456, %v1458
          %v1460 = vrot.slane %v1446, %v1459
          %v1461 = vcombine.low %v1437, %v1453
          %v1462 = vcombine.high %v1437, %v1453
          %v1463 = vcombine.low %v1444, %v1460
          %v1464 = vcombine.high %v1444, %v1460
          %1466 = vrot.lane.b32.xlu0 %v1462, 8
          %v1467 = vpop.permute.xlu0 %1466
          %1470 = vrot.lane.b32.xlu0 %v1463, 16
          %v1471 = vpop.permute.xlu0 %1470
          %1474 = vrot.lane.b32.xlu0 %v1464, 24
          %v1475 = vpop.permute.xlu0 %1474
          %v1477 = vsel %vm560, %v1461, %v1467
          %vm1478 = vcmask 130048
          %v1479 = vsel %vm1478, %v1477, %v1471
          %vm1480 = vcmask 195584
          %v1481 = vsel %vm1480, %v1479, %v1475
          %vm1482 = vcmask 261120
          %1483 = vst.msk [vmem:[%s298] sm:$0xff] %vm1482, %v1481
        $region52: #{tpu_custom_call.1} parent=31 // pred_fallthru
          _
        %s1484 = sand.u32 %s136, 1
        %s1485 = scalar_lea.sflag [#allocation8], %s1484
        %s1486 = sand.u32 %s136, 1
        %s1487 = smul.addr %s1486, 8
        %s1488 = scalar_lea.vmem [#allocation12], %s1487
        // Predicated region
        $region53: #{tpu_custom_call.1} parent=31 // pred_check
          %p1489 = pneg %p146
        $region54: #{tpu_custom_call.1} parent=31 // pred_check_branch
          %1491 = sbr.rel (%p1489) target = $region56
        $region55: #{tpu_custom_call.1} parent=31 // pred_region
          %s1493 = ssub.s32 128, 128
          %1494 = vsyncadd %s1485, %s1493
          %s1495 = sadd.s32 %s28, %s29
          %s1496 = smul.addr %s1495, 128
          %s1497 = scalar_lea.hbm %s3, %s1496
          %s1499 = sshll.u32 %s1488, 4
          %s1500 = int_to_ptr.vmem [resolvable:$true] %s1499
          %1502 = dma.vmem_to_hbm [thread:$0]  %s1500, 128, %s1497, %s1485
        $region56: #{tpu_custom_call.1} parent=31 // pred_fallthru
          _
      $region32: #{tpu_custom_call.1} parent=5 // pred_fallthru
        _
      %p1503 = scmp.le.s32.totalorder 2, %s18
      // Predicated region
      $region57: #{tpu_custom_call.1} parent=5 // pred_check
        %p1504 = pneg %p1503
      $region58: #{tpu_custom_call.1} parent=5 // pred_check_branch
        %1506 = sbr.rel (%p1504) target = $region60
      $region59: #{tpu_custom_call.1} parent=5 // pred_region
        %s1507 = ssub.s32 %s18, 2
        // Predicated region
        $region61: #{tpu_custom_call.1} parent=59 // pred_check
          %p1508 = pneg %p152
        $region62: #{tpu_custom_call.1} parent=59 // pred_check_branch
          %1510 = sbr.rel (%p1508) target = $region64
        $region63: #{tpu_custom_call.1} parent=59 // pred_region
          %s1511 = sand.u32 %s137, 1
          %s1512 = scalar_lea.sflag [#allocation8], %s1511
          %s1513 = sand.u32 %s137, 1
          %s1514 = smul.addr %s1513, 8
          %s1515 = scalar_lea.vmem [#allocation12], %s1514
          %1516 = dma.done %s1512, 128
        $region64: #{tpu_custom_call.1} parent=59 // pred_fallthru
          _
      $region60: #{tpu_custom_call.1} parent=5 // pred_fallthru
        _
    $region6: #{tpu_custom_call.1} parent=1 // loop_footer
      %s22 = sadd.s32 1, %s18
    $region7: #{tpu_custom_call.1} parent=1 // loop_footer_branch
      %17 = sbr.rel target = $region3
    $region8: #{tpu_custom_call.1} parent=1 // loop_exit
      _
    %1517 = vsyncpa [#allocation7], 1
    %s1518 = scalar_lea.sflag [#allocation7], 1
    %1519 = vsyncpa %s1518, 1
    %1520 = vsyncpa [#allocation10], 1
    %s1521 = scalar_lea.sflag [#allocation10], 1
    %1522 = vsyncpa %s1521, 1
    %1523 = vsyncpa [#allocation8], 1
    %s1524 = scalar_lea.sflag [#allocation8], 1
    %1525 = vsyncpa %s1524, 1

</llo_original>
